<compile_context>
chip_gen: v6e
topology: v6e:2x2x1
jax: 0.10.0
libtpu: 0.0.40
codegen_flags: <defaults>
</compile_context>

<pallas_src>
import jax
import jax.numpy as jnp
from jax.experimental import pallas as pl
from jax.experimental.pallas import tpu as pltpu


# ----------------------------------------------------------------------------
# Pallas kernel: T_BLK LSTMCell steps per grid iteration (recurrence in vregs)
# ----------------------------------------------------------------------------
def _lstm_seq_kernel(x_ref, h0_ref, c0_ref, wx_ref, wh_ref, b_ref,
                     h_seq_ref, h_fin_ref, c_fin_ref,
                     h_scr, c_scr):
    # x_ref:    [T_BLK, B, F]  per-grid-step input block
    # h0_ref:   [B, H]         initial hidden state (constant block, resident)
    # c0_ref:   [B, H]         initial cell state
    # wx_ref:   [F, 4H]        W_ih.T, gate cols reordered to (i, f, o, g)
    # wh_ref:   [H, 4H]        W_hh.T, gate cols reordered to (i, f, o, g)
    # b_ref:    [1, 4H]        b_ih + b_hh, gate cols (i, f, o, g)
    # h_seq_ref:[T_BLK, B, H]  per-grid-step hidden output block
    # h_fin/c_fin: [B, H]      final states (written on last grid step only)
    # h_scr/c_scr: [B, H]      VMEM carry of (h, c) across grid steps
    gb = pl.program_id(0)
    T_BLK, B, F = x_ref.shape
    H = h0_ref.shape[1]

    @pl.when(gb == 0)
    def _():
        h_scr[...] = h0_ref[...]
        c_scr[...] = c0_ref[...]

    # Hoisted out of the unrolled time loop (constant, VMEM-resident blocks).
    w_x = wx_ref[...]                                   # [F, 4H]
    w_h = wh_ref[...]                                   # [H, 4H]
    b = jnp.broadcast_to(b_ref[...], (B, 4 * H))        # broadcast once

    # Recurrent carry lives in vregs for the whole unrolled block.
    h = h_scr[...]
    c = c_scr[...]

    for t in range(T_BLK):          # static unroll; T_BLK is small (<= 16)
        x_t = x_ref[t]                                  # [B, F]
        gates = (jnp.dot(x_t, w_x, preferred_element_type=jnp.float32)
                 + jnp.dot(h, w_h, preferred_element_type=jnp.float32)
                 + b)
        # Gate columns pre-ordered (i, f, o, g): one lane-dense sigmoid over
        # the first 3H columns, one tanh over the last H.
        sig = jax.nn.sigmoid(gates[:, :3 * H])
        g_g = jnp.tanh(gates[:, 3 * H:])
        i_g = sig[:, 0 * H:1 * H]
        f_g = sig[:, 1 * H:2 * H]
        o_g = sig[:, 2 * H:3 * H]
        c = f_g * c + i_g * g_g
        h = o_g * jnp.tanh(c)
        # Store into the resident output block; the HBM DMA for the whole
        # [T_BLK, B, H] slab happens once per grid step.
        h_seq_ref[t] = h.astype(h_seq_ref.dtype)

    # Carry state to the next grid step (once per T_BLK steps).
    h_scr[...] = h
    c_scr[...] = c

    @pl.when(gb == pl.num_programs(0) - 1)
    def _():
        h_fin_ref[...] = h.astype(h_fin_ref.dtype)
        c_fin_ref[...] = c.astype(c_fin_ref.dtype)


def _pick_t_blk(T, cap=16):
    """Largest divisor of T that is <= cap (bounds unroll / live ranges)."""
    for cand in range(min(T, cap), 0, -1):
        if T % cand == 0:
            return cand
    return 1


def lstm_sequence_pallas(x_seq, h0, c0, w_x, w_h, gate_bias):
    """x_seq: [T,B,F], h0/c0: [B,H], w_x: [F,4H], w_h: [H,4H], bias: [1,4H].

    Returns (h_seq [T,B,H], h_final [B,H], c_final [B,H])."""
    T, B, F = x_seq.shape
    H = h0.shape[1]
    t_blk = _pick_t_blk(T)
    n_blk = T // t_blk

    grid_spec = pltpu.PrefetchScalarGridSpec(
        num_scalar_prefetch=0,
        grid=(n_blk,),
        in_specs=[
            # per-grid-step input slab (T_BLK timesteps at once)
            pl.BlockSpec((t_blk, B, F), lambda gb: (gb, 0, 0)),
            # constant blocks -> DMA'd once, VMEM-resident across the grid
            pl.BlockSpec((B, H), lambda gb: (0, 0)),
            pl.BlockSpec((B, H), lambda gb: (0, 0)),
            pl.BlockSpec((F, 4 * H), lambda gb: (0, 0)),
            pl.BlockSpec((H, 4 * H), lambda gb: (0, 0)),
            pl.BlockSpec((1, 4 * H), lambda gb: (0, 0)),
        ],
        out_specs=(
            pl.BlockSpec((t_blk, B, H), lambda gb: (gb, 0, 0)),
            pl.BlockSpec((B, H), lambda gb: (0, 0)),
            pl.BlockSpec((B, H), lambda gb: (0, 0)),
        ),
        scratch_shapes=[
            pltpu.VMEM((B, H), jnp.float32),   # h carry across grid steps
            pltpu.VMEM((B, H), jnp.float32),   # c carry across grid steps
        ],
    )

    h_seq, h_fin, c_fin = pl.pallas_call(
        _lstm_seq_kernel,
        out_shape=(
            jax.ShapeDtypeStruct((T, B, H), jnp.float32),
            jax.ShapeDtypeStruct((B, H), jnp.float32),
            jax.ShapeDtypeStruct((B, H), jnp.float32),
        ),
        grid_spec=grid_spec,
        compiler_params=pltpu.CompilerParams(
            dimension_semantics=("arbitrary",)),   # recurrent carry over T
    )(x_seq.astype(jnp.float32), h0.astype(jnp.float32),
      c0.astype(jnp.float32), w_x, w_h, gate_bias)
    return h_seq, h_fin, c_fin


# ----------------------------------------------------------------------------
# Parameter preprocessing (done ONCE in __init__, not per step)
# ----------------------------------------------------------------------------
def _reorder_gates(p):
    # PyTorch LSTMCell gate order (i, f, g, o) -> kernel order (i, f, o, g)
    i, f, g, o = jnp.split(p, 4, axis=0)
    return jnp.concatenate([i, f, o, g], axis=0)


def _prep_lstm_weights(w_ih, w_hh, b_ih, b_hh):
    w_x = _reorder_gates(w_ih).T                        # [F, 4H]
    w_h = _reorder_gates(w_hh).T                        # [H, 4H]
    b = _reorder_gates(b_ih + b_hh).reshape(1, -1)      # [1, 4H]
    return (w_x.astype(jnp.float32), w_h.astype(jnp.float32),
            b.astype(jnp.float32))


# ----------------------------------------------------------------------------
# NTMController (parameters + forward / reset / output glue)
# ----------------------------------------------------------------------------
class NTMControllerPallas:
    def __init__(self, input_size, controller_size, output_size,
                 read_data_size, key):
        self.input_size = input_size
        self.controller_size = controller_size
        self.output_size = output_size
        self.read_data_size = read_data_size

        ks = jax.random.split(key, 10)
        H = controller_size
        k_lstm = 1.0 / jnp.sqrt(H)

        # nn.LSTMCell(input_size, controller_size) parameters (PyTorch layout).
        self.w_ih = jax.random.uniform(ks[0], (4 * H, input_size),
                                       minval=-k_lstm, maxval=k_lstm)
        self.w_hh = jax.random.uniform(ks[1], (4 * H, H),
                                       minval=-k_lstm, maxval=k_lstm)
        self.b_ih = jax.random.uniform(ks[2], (4 * H,),
                                       minval=-k_lstm, maxval=k_lstm)
        self.b_hh = jax.random.uniform(ks[3], (4 * H,),
                                       minval=-k_lstm, maxval=k_lstm)

        # Pre-reordered / pre-transposed weights for the kernel (hoisted once).
        self.w_x, self.w_h, self.gate_bias = _prep_lstm_weights(
            self.w_ih, self.w_hh, self.b_ih, self.b_hh)

        # nn.Linear(read_data_size, output_size) with kaiming_uniform weight.
        bound_out = jnp.sqrt(6.0 / read_data_size)
        self.out_w = jax.random.uniform(ks[4], (output_size, read_data_size),
                                        minval=-bound_out, maxval=bound_out)
        k_out = 1.0 / jnp.sqrt(read_data_size)
        self.out_b = jax.random.uniform(ks[5], (output_size,),
                                        minval=-k_out, maxval=k_out)

        # nn.Linear(1, controller_size) bias FCs for reset().
        self.h_bias_w = jax.random.uniform(ks[6], (H, 1), minval=-1.0, maxval=1.0)
        self.h_bias_b = jax.random.uniform(ks[7], (H,), minval=-1.0, maxval=1.0)
        self.c_bias_w = jax.random.uniform(ks[8], (H, 1), minval=-1.0, maxval=1.0)
        self.c_bias_b = jax.random.uniform(ks[9], (H,), minval=-1.0, maxval=1.0)

        self.h_state = jnp.zeros((1, H), jnp.float32)
        self.c_state = jnp.zeros((1, H), jnp.float32)

    def reset(self, batch_size=1):
        in_data = jnp.array([[0.0]], jnp.float32)                  # [1, 1]
        h_bias = in_data @ self.h_bias_w.T + self.h_bias_b         # [1, H]
        c_bias = in_data @ self.c_bias_w.T + self.c_bias_b         # [1, H]
        self.h_state = jnp.tile(h_bias, (batch_size, 1))
        self.c_state = jnp.tile(c_bias, (batch_size, 1))

    # --- fused multi-step path (preferred) -------------------------------
    def forward_sequence(self, x_seq):
        """x_seq: [T, B, input_size]; runs the whole sequence in one kernel."""
        h_seq, h_fin, c_fin = lstm_sequence_pallas(
            x_seq, self.h_state, self.c_state,
            self.w_x, self.w_h, self.gate_bias)
        self.h_state, self.c_state = h_fin, c_fin
        return h_seq, (h_fin, c_fin)

    # --- single-step path (original PyTorch forward semantics) -----------
    def forward(self, in_data, prev_reads):
        # TODO(synk): for a decode loop, alias h/c via input_output_aliases
        # and keep weights resident across calls (cross-call prefetch).
        x = jnp.concatenate([in_data] + list(prev_reads), axis=-1)   # [B, F]
        assert x.shape[-1] == self.input_size
        _, (h, c) = self.forward_sequence(x[None])                   # T = 1
        return h, c

    def output(self, read_data):
        complete = jnp.concatenate([self.h_state] + list(read_data), axis=-1)
        return jax.nn.sigmoid(complete @ self.out_w.T + self.out_b)


# ----------------------------------------------------------------------------
# Pure-JAX reference (uses the ORIGINAL un-reordered PyTorch-layout weights)
# ----------------------------------------------------------------------------
def lstm_cell_ref(x, h, c, w_ih, w_hh, b_ih, b_hh):
    H = h.shape[1]
    hi = jax.lax.Precision.HIGHEST
    gates = (jnp.dot(x, w_ih.T, precision=hi) + b_ih
             + jnp.dot(h, w_hh.T, precision=hi) + b_hh)
    i_g = jax.nn.sigmoid(gates[:, 0 * H:1 * H])
    f_g = jax.nn.sigmoid(gates[:, 1 * H:2 * H])
    g_g = jnp.tanh(gates[:, 2 * H:3 * H])
    o_g = jax.nn.sigmoid(gates[:, 3 * H:4 * H])
    c_new = f_g * c + i_g * g_g
    h_new = o_g * jnp.tanh(c_new)
    return h_new, c_new


if __name__ == "__main__":
    key = jax.random.PRNGKey(0)
    k_param, k_in, k_r1, k_r2 = jax.random.split(key, 4)

    # Batch = 8 fills the f32 sublane dimension.
    batch = 8
    T = 8
    in_dim = 8
    read_dim = 12
    num_reads = 2
    input_size = in_dim + num_reads * read_dim      # 32 (LSTMCell input)
    controller_size = 32
    output_size = 16
    read_data_size = controller_size + num_reads * read_dim

    ctrl = NTMControllerPallas(input_size, controller_size, output_size,
                               read_data_size, k_param)
    ctrl.reset(batch_size=batch)
    h0, c0 = ctrl.h_state, ctrl.c_state

    # Per-step inputs: in_data + prev_reads, pre-concatenated into x_seq.
    in_seq = jax.random.normal(k_in, (T, batch, in_dim), jnp.float32)
    r1_seq = jax.random.normal(k_r1, (T, batch, read_dim), jnp.float32)
    r2_seq = jax.random.normal(k_r2, (T, batch, read_dim), jnp.float32)
    x_seq = jnp.concatenate([in_seq, r1_seq, r2_seq], axis=-1)   # [T, B, 32]

    # --- fused sequence kernel (whole sequence, grid=(1,) at T=8) --------
    h_seq, (h_fin, c_fin) = ctrl.forward_sequence(x_seq)
    jax.block_until_ready((h_seq, h_fin, c_fin))

    # --- pure-JAX reference loop ------------------------------------------
    h_ref, c_ref = h0, c0
    h_seq_ref = []
    for t in range(T):
        h_ref, c_ref = lstm_cell_ref(x_seq[t], h_ref, c_ref,
                                     ctrl.w_ih, ctrl.w_hh,
                                     ctrl.b_ih, ctrl.b_hh)
        h_seq_ref.append(h_ref)
    h_seq_ref = jnp.stack(h_seq_ref, axis=0)

    assert jnp.allclose(h_seq, h_seq_ref, atol=1e-4, rtol=1e-4)
    assert jnp.allclose(h_fin, h_ref, atol=1e-4, rtol=1e-4)
    assert jnp.allclose(c_fin, c_ref, atol=1e-4, rtol=1e-4)
    assert h_seq.shape == (T, batch, controller_size)
    assert h_fin.shape == (batch, controller_size)
    assert c_fin.shape == (batch, controller_size)

    # --- single-step forward() (original module semantics) ---------------
    ctrl.reset(batch_size=batch)
    h1, c1 = ctrl.forward(in_seq[0], [r1_seq[0], r2_seq[0]])
    jax.block_until_ready((h1, c1))
    h1_ref, c1_ref = lstm_cell_ref(x_seq[0], h0, c0, ctrl.w_ih, ctrl.w_hh,
                                   ctrl.b_ih, ctrl.b_hh)
    assert jnp.allclose(h1, h1_ref, atol=1e-4, rtol=1e-4)
    assert jnp.allclose(c1, c1_ref, atol=1e-4, rtol=1e-4)

    # --- output() head (plain JAX glue, matches nn.Linear + sigmoid) ------
    out = ctrl.output([r1_seq[0], r2_seq[0]])
    jax.block_until_ready(out)
    assert out.shape == (batch, output_size)

    print("KERNEL_OK")
</pallas_src>

<mosaic_0001>
module attributes {stable_mosaic.version = 11 : i64} {
  func.func @_lstm_seq_kernel(%arg0: i32, %arg1: memref<8x8x32xf32, #tpu.memory_space<vmem>>, %arg2: memref<8x32xf32, #tpu.memory_space<vmem>>, %arg3: memref<8x32xf32, #tpu.memory_space<vmem>>, %arg4: memref<32x128xf32, #tpu.memory_space<vmem>>, %arg5: memref<32x128xf32, #tpu.memory_space<vmem>>, %arg6: memref<1x128xf32, #tpu.memory_space<vmem>>, %arg7: memref<8x8x32xf32, #tpu.memory_space<vmem>>, %arg8: memref<8x32xf32, #tpu.memory_space<vmem>>, %arg9: memref<8x32xf32, #tpu.memory_space<vmem>>, %arg10: memref<8x32xf32, #tpu.memory_space<vmem>>, %arg11: memref<8x32xf32, #tpu.memory_space<vmem>>) attributes {dimension_semantics = [#tpu.dimension_semantics<arbitrary>], iteration_bounds = array<i64: 1>, scalar_prefetch = 0 : i64, scratch_operands = 2 : i64, tpu.core_type = #tpu.core_type<tc>, window_params = [{transform_indices = @transform_0, window_bounds = array<i64: 8, 8, 32>}, {pipeline_mode = #tpu.pipeline_mode<synchronous>, transform_indices = @transform_1, window_bounds = array<i64: 8, 32>}, {pipeline_mode = #tpu.pipeline_mode<synchronous>, transform_indices = @transform_2, window_bounds = array<i64: 8, 32>}, {pipeline_mode = #tpu.pipeline_mode<synchronous>, transform_indices = @transform_3, window_bounds = array<i64: 32, 128>}, {pipeline_mode = #tpu.pipeline_mode<synchronous>, transform_indices = @transform_4, window_bounds = array<i64: 32, 128>}, {pipeline_mode = #tpu.pipeline_mode<synchronous>, transform_indices = @transform_5, window_bounds = array<i64: 1, 128>}, {transform_indices = @transform_6, window_bounds = array<i64: 8, 8, 32>}, {pipeline_mode = #tpu.pipeline_mode<synchronous>, transform_indices = @transform_7, window_bounds = array<i64: 8, 32>}, {pipeline_mode = #tpu.pipeline_mode<synchronous>, transform_indices = @transform_8, window_bounds = array<i64: 8, 32>}]} {
    %c0_i32 = arith.constant 0 : i32
    %0 = arith.cmpi eq, %arg0, %c0_i32 : i32
    %1 = arith.extui %0 : i1 to i32
    %c0_i32_0 = arith.constant 0 : i32
    %2 = arith.cmpi ne, %1, %c0_i32_0 : i32
    scf.if %2 {
      %c0_80 = arith.constant 0 : index
      %c0_81 = arith.constant 0 : index
      %215 = vector.load %arg2[%c0_80, %c0_81] : memref<8x32xf32, #tpu.memory_space<vmem>>, vector<8x32xf32>
      %c0_82 = arith.constant 0 : index
      %c0_83 = arith.constant 0 : index
      %216 = vector.load %arg10[%c0_82, %c0_83] : memref<8x32xf32, #tpu.memory_space<vmem>>, vector<8x32xf32>
      tpu.vector_store %arg10[%c0_82, %c0_83], %215 {strides = array<i32>} : memref<8x32xf32, #tpu.memory_space<vmem>>, vector<8x32xf32>,
      %c0_84 = arith.constant 0 : index
      %c0_85 = arith.constant 0 : index
      %217 = vector.load %arg3[%c0_84, %c0_85] : memref<8x32xf32, #tpu.memory_space<vmem>>, vector<8x32xf32>
      %c0_86 = arith.constant 0 : index
      %c0_87 = arith.constant 0 : index
      %218 = vector.load %arg11[%c0_86, %c0_87] : memref<8x32xf32, #tpu.memory_space<vmem>>, vector<8x32xf32>
      tpu.vector_store %arg11[%c0_86, %c0_87], %217 {strides = array<i32>} : memref<8x32xf32, #tpu.memory_space<vmem>>, vector<8x32xf32>,
    } else {
    }
    %c0 = arith.constant 0 : index
    %c0_1 = arith.constant 0 : index
    %3 = vector.load %arg4[%c0, %c0_1] : memref<32x128xf32, #tpu.memory_space<vmem>>, vector<32x128xf32>
    %c0_2 = arith.constant 0 : index
    %c0_3 = arith.constant 0 : index
    %4 = vector.load %arg5[%c0_2, %c0_3] : memref<32x128xf32, #tpu.memory_space<vmem>>, vector<32x128xf32>
    %c0_4 = arith.constant 0 : index
    %c0_5 = arith.constant 0 : index
    %5 = vector.load %arg6[%c0_4, %c0_5] : memref<1x128xf32, #tpu.memory_space<vmem>>, vector<1x128xf32>
    %6 = vector.shape_cast %5 : vector<1x128xf32> to vector<1x128xf32>
    %7 = vector.broadcast %6 : vector<1x128xf32> to vector<8x128xf32>
    %c0_6 = arith.constant 0 : index
    %c0_7 = arith.constant 0 : index
    %8 = vector.load %arg10[%c0_6, %c0_7] : memref<8x32xf32, #tpu.memory_space<vmem>>, vector<8x32xf32>
    %c0_8 = arith.constant 0 : index
    %c0_9 = arith.constant 0 : index
    %9 = vector.load %arg11[%c0_8, %c0_9] : memref<8x32xf32, #tpu.memory_space<vmem>>, vector<8x32xf32>
    %c0_10 = arith.constant 0 : index
    %c0_11 = arith.constant 0 : index
    %c0_12 = arith.constant 0 : index
    %10 = vector.load %arg1[%c0_10, %c0_11, %c0_12] : memref<8x8x32xf32, #tpu.memory_space<vmem>>, vector<1x8x32xf32>
    %11 = vector.shape_cast %10 : vector<1x8x32xf32> to vector<8x32xf32>
    %cst = arith.constant dense<0.000000e+00> : vector<8x128xf32>
    %12 = tpu.matmul %11, %3, %cst {dimension_numbers = #tpu.dot_dimension_numbers<[1], [0], [0], [1], [0, 0, 1, 1], [], []>} : vector<8x32xf32>, vector<32x128xf32>, vector<8x128xf32> -> vector<8x128xf32>
    %cst_13 = arith.constant dense<0.000000e+00> : vector<8x128xf32>
    %13 = tpu.matmul %8, %4, %cst_13 {dimension_numbers = #tpu.dot_dimension_numbers<[1], [0], [0], [1], [0, 0, 1, 1], [], []>} : vector<8x32xf32>, vector<32x128xf32>, vector<8x128xf32> -> vector<8x128xf32>
    %14 = arith.addf %12, %13 : vector<8x128xf32>
    %15 = arith.addf %14, %7 : vector<8x128xf32>
    %16 = vector.extract_strided_slice %15 {offsets = [0, 0], sizes = [8, 96], strides = [1, 1]} : vector<8x128xf32> to vector<8x96xf32>
    %17 = arith.negf %16 : vector<8x96xf32>
    %18 = math.exp %17 : vector<8x96xf32>
    %cst_14 = arith.constant 1.000000e+00 : f32
    %19 = vector.broadcast %cst_14 : f32 to vector<8x96xf32>
    %20 = arith.addf %19, %18 : vector<8x96xf32>
    %21 = arith.divf %19, %20 : vector<8x96xf32>
    %22 = vector.extract_strided_slice %15 {offsets = [0, 96], sizes = [8, 32], strides = [1, 1]} : vector<8x128xf32> to vector<8x32xf32>
    %23 = math.tanh %22 : vector<8x32xf32>
    %24 = vector.extract_strided_slice %21 {offsets = [0, 0], sizes = [8, 32], strides = [1, 1]} : vector<8x96xf32> to vector<8x32xf32>
    %25 = vector.extract_strided_slice %21 {offsets = [0, 32], sizes = [8, 32], strides = [1, 1]} : vector<8x96xf32> to vector<8x32xf32>
    %26 = vector.extract_strided_slice %21 {offsets = [0, 64], sizes = [8, 32], strides = [1, 1]} : vector<8x96xf32> to vector<8x32xf32>
    %27 = arith.mulf %25, %9 : vector<8x32xf32>
    %28 = arith.mulf %24, %23 : vector<8x32xf32>
    %29 = arith.addf %27, %28 : vector<8x32xf32>
    %30 = math.tanh %29 : vector<8x32xf32>
    %31 = arith.mulf %26, %30 : vector<8x32xf32>
    %c0_15 = arith.constant 0 : index
    %c0_16 = arith.constant 0 : index
    %c0_17 = arith.constant 0 : index
    %32 = vector.load %arg7[%c0_15, %c0_16, %c0_17] : memref<8x8x32xf32, #tpu.memory_space<vmem>>, vector<1x8x32xf32>
    %33 = vector.shape_cast %32 : vector<1x8x32xf32> to vector<8x32xf32>
    %34 = vector.shape_cast %31 : vector<8x32xf32> to vector<1x8x32xf32>
    tpu.vector_store %arg7[%c0_15, %c0_16, %c0_17], %34 {strides = array<i32>} : memref<8x8x32xf32, #tpu.memory_space<vmem>>, vector<1x8x32xf32>,
    %c1 = arith.constant 1 : index
    %c0_18 = arith.constant 0 : index
    %c0_19 = arith.constant 0 : index
    %35 = vector.load %arg1[%c1, %c0_18, %c0_19] : memref<8x8x32xf32, #tpu.memory_space<vmem>>, vector<1x8x32xf32>
    %36 = vector.shape_cast %35 : vector<1x8x32xf32> to vector<8x32xf32>
    %cst_20 = arith.constant dense<0.000000e+00> : vector<8x128xf32>
    %37 = tpu.matmul %36, %3, %cst_20 {dimension_numbers = #tpu.dot_dimension_numbers<[1], [0], [0], [1], [0, 0, 1, 1], [], []>} : vector<8x32xf32>, vector<32x128xf32>, vector<8x128xf32> -> vector<8x128xf32>
    %cst_21 = arith.constant dense<0.000000e+00> : vector<8x128xf32>
    %38 = tpu.matmul %31, %4, %cst_21 {dimension_numbers = #tpu.dot_dimension_numbers<[1], [0], [0], [1], [0, 0, 1, 1], [], []>} : vector<8x32xf32>, vector<32x128xf32>, vector<8x128xf32> -> vector<8x128xf32>
    %39 = arith.addf %37, %38 : vector<8x128xf32>
    %40 = arith.addf %39, %7 : vector<8x128xf32>
    %41 = vector.extract_strided_slice %40 {offsets = [0, 0], sizes = [8, 96], strides = [1, 1]} : vector<8x128xf32> to vector<8x96xf32>
    %42 = arith.negf %41 : vector<8x96xf32>
    %43 = math.exp %42 : vector<8x96xf32>
    %cst_22 = arith.constant 1.000000e+00 : f32
    %44 = vector.broadcast %cst_22 : f32 to vector<8x96xf32>
    %45 = arith.addf %44, %43 : vector<8x96xf32>
    %46 = arith.divf %44, %45 : vector<8x96xf32>
    %47 = vector.extract_strided_slice %40 {offsets = [0, 96], sizes = [8, 32], strides = [1, 1]} : vector<8x128xf32> to vector<8x32xf32>
    %48 = math.tanh %47 : vector<8x32xf32>
    %49 = vector.extract_strided_slice %46 {offsets = [0, 0], sizes = [8, 32], strides = [1, 1]} : vector<8x96xf32> to vector<8x32xf32>
    %50 = vector.extract_strided_slice %46 {offsets = [0, 32], sizes = [8, 32], strides = [1, 1]} : vector<8x96xf32> to vector<8x32xf32>
    %51 = vector.extract_strided_slice %46 {offsets = [0, 64], sizes = [8, 32], strides = [1, 1]} : vector<8x96xf32> to vector<8x32xf32>
    %52 = arith.mulf %50, %29 : vector<8x32xf32>
    %53 = arith.mulf %49, %48 : vector<8x32xf32>
    %54 = arith.addf %52, %53 : vector<8x32xf32>
    %55 = math.tanh %54 : vector<8x32xf32>
    %56 = arith.mulf %51, %55 : vector<8x32xf32>
    %c1_23 = arith.constant 1 : index
    %c0_24 = arith.constant 0 : index
    %c0_25 = arith.constant 0 : index
    %57 = vector.load %arg7[%c1_23, %c0_24, %c0_25] : memref<8x8x32xf32, #tpu.memory_space<vmem>>, vector<1x8x32xf32>
    %58 = vector.shape_cast %57 : vector<1x8x32xf32> to vector<8x32xf32>
    %59 = vector.shape_cast %56 : vector<8x32xf32> to vector<1x8x32xf32>
    tpu.vector_store %arg7[%c1_23, %c0_24, %c0_25], %59 {strides = array<i32>} : memref<8x8x32xf32, #tpu.memory_space<vmem>>, vector<1x8x32xf32>,
    %c2 = arith.constant 2 : index
    %c0_26 = arith.constant 0 : index
    %c0_27 = arith.constant 0 : index
    %60 = vector.load %arg1[%c2, %c0_26, %c0_27] : memref<8x8x32xf32, #tpu.memory_space<vmem>>, vector<1x8x32xf32>
    %61 = vector.shape_cast %60 : vector<1x8x32xf32> to vector<8x32xf32>
    %cst_28 = arith.constant dense<0.000000e+00> : vector<8x128xf32>
    %62 = tpu.matmul %61, %3, %cst_28 {dimension_numbers = #tpu.dot_dimension_numbers<[1], [0], [0], [1], [0, 0, 1, 1], [], []>} : vector<8x32xf32>, vector<32x128xf32>, vector<8x128xf32> -> vector<8x128xf32>
    %cst_29 = arith.constant dense<0.000000e+00> : vector<8x128xf32>
    %63 = tpu.matmul %56, %4, %cst_29 {dimension_numbers = #tpu.dot_dimension_numbers<[1], [0], [0], [1], [0, 0, 1, 1], [], []>} : vector<8x32xf32>, vector<32x128xf32>, vector<8x128xf32> -> vector<8x128xf32>
    %64 = arith.addf %62, %63 : vector<8x128xf32>
    %65 = arith.addf %64, %7 : vector<8x128xf32>
    %66 = vector.extract_strided_slice %65 {offsets = [0, 0], sizes = [8, 96], strides = [1, 1]} : vector<8x128xf32> to vector<8x96xf32>
    %67 = arith.negf %66 : vector<8x96xf32>
    %68 = math.exp %67 : vector<8x96xf32>
    %cst_30 = arith.constant 1.000000e+00 : f32
    %69 = vector.broadcast %cst_30 : f32 to vector<8x96xf32>
    %70 = arith.addf %69, %68 : vector<8x96xf32>
    %71 = arith.divf %69, %70 : vector<8x96xf32>
    %72 = vector.extract_strided_slice %65 {offsets = [0, 96], sizes = [8, 32], strides = [1, 1]} : vector<8x128xf32> to vector<8x32xf32>
    %73 = math.tanh %72 : vector<8x32xf32>
    %74 = vector.extract_strided_slice %71 {offsets = [0, 0], sizes = [8, 32], strides = [1, 1]} : vector<8x96xf32> to vector<8x32xf32>
    %75 = vector.extract_strided_slice %71 {offsets = [0, 32], sizes = [8, 32], strides = [1, 1]} : vector<8x96xf32> to vector<8x32xf32>
    %76 = vector.extract_strided_slice %71 {offsets = [0, 64], sizes = [8, 32], strides = [1, 1]} : vector<8x96xf32> to vector<8x32xf32>
    %77 = arith.mulf %75, %54 : vector<8x32xf32>
    %78 = arith.mulf %74, %73 : vector<8x32xf32>
    %79 = arith.addf %77, %78 : vector<8x32xf32>
    %80 = math.tanh %79 : vector<8x32xf32>
    %81 = arith.mulf %76, %80 : vector<8x32xf32>
    %c2_31 = arith.constant 2 : index
    %c0_32 = arith.constant 0 : index
    %c0_33 = arith.constant 0 : index
    %82 = vector.load %arg7[%c2_31, %c0_32, %c0_33] : memref<8x8x32xf32, #tpu.memory_space<vmem>>, vector<1x8x32xf32>
    %83 = vector.shape_cast %82 : vector<1x8x32xf32> to vector<8x32xf32>
    %84 = vector.shape_cast %81 : vector<8x32xf32> to vector<1x8x32xf32>
    tpu.vector_store %arg7[%c2_31, %c0_32, %c0_33], %84 {strides = array<i32>} : memref<8x8x32xf32, #tpu.memory_space<vmem>>, vector<1x8x32xf32>,
    %c3 = arith.constant 3 : index
    %c0_34 = arith.constant 0 : index
    %c0_35 = arith.constant 0 : index
    %85 = vector.load %arg1[%c3, %c0_34, %c0_35] : memref<8x8x32xf32, #tpu.memory_space<vmem>>, vector<1x8x32xf32>
    %86 = vector.shape_cast %85 : vector<1x8x32xf32> to vector<8x32xf32>
    %cst_36 = arith.constant dense<0.000000e+00> : vector<8x128xf32>
    %87 = tpu.matmul %86, %3, %cst_36 {dimension_numbers = #tpu.dot_dimension_numbers<[1], [0], [0], [1], [0, 0, 1, 1], [], []>} : vector<8x32xf32>, vector<32x128xf32>, vector<8x128xf32> -> vector<8x128xf32>
    %cst_37 = arith.constant dense<0.000000e+00> : vector<8x128xf32>
    %88 = tpu.matmul %81, %4, %cst_37 {dimension_numbers = #tpu.dot_dimension_numbers<[1], [0], [0], [1], [0, 0, 1, 1], [], []>} : vector<8x32xf32>, vector<32x128xf32>, vector<8x128xf32> -> vector<8x128xf32>
    %89 = arith.addf %87, %88 : vector<8x128xf32>
    %90 = arith.addf %89, %7 : vector<8x128xf32>
    %91 = vector.extract_strided_slice %90 {offsets = [0, 0], sizes = [8, 96], strides = [1, 1]} : vector<8x128xf32> to vector<8x96xf32>
    %92 = arith.negf %91 : vector<8x96xf32>
    %93 = math.exp %92 : vector<8x96xf32>
    %cst_38 = arith.constant 1.000000e+00 : f32
    %94 = vector.broadcast %cst_38 : f32 to vector<8x96xf32>
    %95 = arith.addf %94, %93 : vector<8x96xf32>
    %96 = arith.divf %94, %95 : vector<8x96xf32>
    %97 = vector.extract_strided_slice %90 {offsets = [0, 96], sizes = [8, 32], strides = [1, 1]} : vector<8x128xf32> to vector<8x32xf32>
    %98 = math.tanh %97 : vector<8x32xf32>
    %99 = vector.extract_strided_slice %96 {offsets = [0, 0], sizes = [8, 32], strides = [1, 1]} : vector<8x96xf32> to vector<8x32xf32>
    %100 = vector.extract_strided_slice %96 {offsets = [0, 32], sizes = [8, 32], strides = [1, 1]} : vector<8x96xf32> to vector<8x32xf32>
    %101 = vector.extract_strided_slice %96 {offsets = [0, 64], sizes = [8, 32], strides = [1, 1]} : vector<8x96xf32> to vector<8x32xf32>
    %102 = arith.mulf %100, %79 : vector<8x32xf32>
    %103 = arith.mulf %99, %98 : vector<8x32xf32>
    %104 = arith.addf %102, %103 : vector<8x32xf32>
    %105 = math.tanh %104 : vector<8x32xf32>
    %106 = arith.mulf %101, %105 : vector<8x32xf32>
    %c3_39 = arith.constant 3 : index
    %c0_40 = arith.constant 0 : index
    %c0_41 = arith.constant 0 : index
    %107 = vector.load %arg7[%c3_39, %c0_40, %c0_41] : memref<8x8x32xf32, #tpu.memory_space<vmem>>, vector<1x8x32xf32>
    %108 = vector.shape_cast %107 : vector<1x8x32xf32> to vector<8x32xf32>
    %109 = vector.shape_cast %106 : vector<8x32xf32> to vector<1x8x32xf32>
    tpu.vector_store %arg7[%c3_39, %c0_40, %c0_41], %109 {strides = array<i32>} : memref<8x8x32xf32, #tpu.memory_space<vmem>>, vector<1x8x32xf32>,
    %c4 = arith.constant 4 : index
    %c0_42 = arith.constant 0 : index
    %c0_43 = arith.constant 0 : index
    %110 = vector.load %arg1[%c4, %c0_42, %c0_43] : memref<8x8x32xf32, #tpu.memory_space<vmem>>, vector<1x8x32xf32>
    %111 = vector.shape_cast %110 : vector<1x8x32xf32> to vector<8x32xf32>
    %cst_44 = arith.constant dense<0.000000e+00> : vector<8x128xf32>
    %112 = tpu.matmul %111, %3, %cst_44 {dimension_numbers = #tpu.dot_dimension_numbers<[1], [0], [0], [1], [0, 0, 1, 1], [], []>} : vector<8x32xf32>, vector<32x128xf32>, vector<8x128xf32> -> vector<8x128xf32>
    %cst_45 = arith.constant dense<0.000000e+00> : vector<8x128xf32>
    %113 = tpu.matmul %106, %4, %cst_45 {dimension_numbers = #tpu.dot_dimension_numbers<[1], [0], [0], [1], [0, 0, 1, 1], [], []>} : vector<8x32xf32>, vector<32x128xf32>, vector<8x128xf32> -> vector<8x128xf32>
    %114 = arith.addf %112, %113 : vector<8x128xf32>
    %115 = arith.addf %114, %7 : vector<8x128xf32>
    %116 = vector.extract_strided_slice %115 {offsets = [0, 0], sizes = [8, 96], strides = [1, 1]} : vector<8x128xf32> to vector<8x96xf32>
    %117 = arith.negf %116 : vector<8x96xf32>
    %118 = math.exp %117 : vector<8x96xf32>
    %cst_46 = arith.constant 1.000000e+00 : f32
    %119 = vector.broadcast %cst_46 : f32 to vector<8x96xf32>
    %120 = arith.addf %119, %118 : vector<8x96xf32>
    %121 = arith.divf %119, %120 : vector<8x96xf32>
    %122 = vector.extract_strided_slice %115 {offsets = [0, 96], sizes = [8, 32], strides = [1, 1]} : vector<8x128xf32> to vector<8x32xf32>
    %123 = math.tanh %122 : vector<8x32xf32>
    %124 = vector.extract_strided_slice %121 {offsets = [0, 0], sizes = [8, 32], strides = [1, 1]} : vector<8x96xf32> to vector<8x32xf32>
    %125 = vector.extract_strided_slice %121 {offsets = [0, 32], sizes = [8, 32], strides = [1, 1]} : vector<8x96xf32> to vector<8x32xf32>
    %126 = vector.extract_strided_slice %121 {offsets = [0, 64], sizes = [8, 32], strides = [1, 1]} : vector<8x96xf32> to vector<8x32xf32>
    %127 = arith.mulf %125, %104 : vector<8x32xf32>
    %128 = arith.mulf %124, %123 : vector<8x32xf32>
    %129 = arith.addf %127, %128 : vector<8x32xf32>
    %130 = math.tanh %129 : vector<8x32xf32>
    %131 = arith.mulf %126, %130 : vector<8x32xf32>
    %c4_47 = arith.constant 4 : index
    %c0_48 = arith.constant 0 : index
    %c0_49 = arith.constant 0 : index
    %132 = vector.load %arg7[%c4_47, %c0_48, %c0_49] : memref<8x8x32xf32, #tpu.memory_space<vmem>>, vector<1x8x32xf32>
    %133 = vector.shape_cast %132 : vector<1x8x32xf32> to vector<8x32xf32>
    %134 = vector.shape_cast %131 : vector<8x32xf32> to vector<1x8x32xf32>
    tpu.vector_store %arg7[%c4_47, %c0_48, %c0_49], %134 {strides = array<i32>} : memref<8x8x32xf32, #tpu.memory_space<vmem>>, vector<1x8x32xf32>,
    %c5 = arith.constant 5 : index
    %c0_50 = arith.constant 0 : index
    %c0_51 = arith.constant 0 : index
    %135 = vector.load %arg1[%c5, %c0_50, %c0_51] : memref<8x8x32xf32, #tpu.memory_space<vmem>>, vector<1x8x32xf32>
    %136 = vector.shape_cast %135 : vector<1x8x32xf32> to vector<8x32xf32>
    %cst_52 = arith.constant dense<0.000000e+00> : vector<8x128xf32>
    %137 = tpu.matmul %136, %3, %cst_52 {dimension_numbers = #tpu.dot_dimension_numbers<[1], [0], [0], [1], [0, 0, 1, 1], [], []>} : vector<8x32xf32>, vector<32x128xf32>, vector<8x128xf32> -> vector<8x128xf32>
    %cst_53 = arith.constant dense<0.000000e+00> : vector<8x128xf32>
    %138 = tpu.matmul %131, %4, %cst_53 {dimension_numbers = #tpu.dot_dimension_numbers<[1], [0], [0], [1], [0, 0, 1, 1], [], []>} : vector<8x32xf32>, vector<32x128xf32>, vector<8x128xf32> -> vector<8x128xf32>
    %139 = arith.addf %137, %138 : vector<8x128xf32>
    %140 = arith.addf %139, %7 : vector<8x128xf32>
    %141 = vector.extract_strided_slice %140 {offsets = [0, 0], sizes = [8, 96], strides = [1, 1]} : vector<8x128xf32> to vector<8x96xf32>
    %142 = arith.negf %141 : vector<8x96xf32>
    %143 = math.exp %142 : vector<8x96xf32>
    %cst_54 = arith.constant 1.000000e+00 : f32
    %144 = vector.broadcast %cst_54 : f32 to vector<8x96xf32>
    %145 = arith.addf %144, %143 : vector<8x96xf32>
    %146 = arith.divf %144, %145 : vector<8x96xf32>
    %147 = vector.extract_strided_slice %140 {offsets = [0, 96], sizes = [8, 32], strides = [1, 1]} : vector<8x128xf32> to vector<8x32xf32>
    %148 = math.tanh %147 : vector<8x32xf32>
    %149 = vector.extract_strided_slice %146 {offsets = [0, 0], sizes = [8, 32], strides = [1, 1]} : vector<8x96xf32> to vector<8x32xf32>
    %150 = vector.extract_strided_slice %146 {offsets = [0, 32], sizes = [8, 32], strides = [1, 1]} : vector<8x96xf32> to vector<8x32xf32>
    %151 = vector.extract_strided_slice %146 {offsets = [0, 64], sizes = [8, 32], strides = [1, 1]} : vector<8x96xf32> to vector<8x32xf32>
    %152 = arith.mulf %150, %129 : vector<8x32xf32>
    %153 = arith.mulf %149, %148 : vector<8x32xf32>
    %154 = arith.addf %152, %153 : vector<8x32xf32>
    %155 = math.tanh %154 : vector<8x32xf32>
    %156 = arith.mulf %151, %155 : vector<8x32xf32>
    %c5_55 = arith.constant 5 : index
    %c0_56 = arith.constant 0 : index
    %c0_57 = arith.constant 0 : index
    %157 = vector.load %arg7[%c5_55, %c0_56, %c0_57] : memref<8x8x32xf32, #tpu.memory_space<vmem>>, vector<1x8x32xf32>
    %158 = vector.shape_cast %157 : vector<1x8x32xf32> to vector<8x32xf32>
    %159 = vector.shape_cast %156 : vector<8x32xf32> to vector<1x8x32xf32>
    tpu.vector_store %arg7[%c5_55, %c0_56, %c0_57], %159 {strides = array<i32>} : memref<8x8x32xf32, #tpu.memory_space<vmem>>, vector<1x8x32xf32>,
    %c6 = arith.constant 6 : index
    %c0_58 = arith.constant 0 : index
    %c0_59 = arith.constant 0 : index
    %160 = vector.load %arg1[%c6, %c0_58, %c0_59] : memref<8x8x32xf32, #tpu.memory_space<vmem>>, vector<1x8x32xf32>
    %161 = vector.shape_cast %160 : vector<1x8x32xf32> to vector<8x32xf32>
    %cst_60 = arith.constant dense<0.000000e+00> : vector<8x128xf32>
    %162 = tpu.matmul %161, %3, %cst_60 {dimension_numbers = #tpu.dot_dimension_numbers<[1], [0], [0], [1], [0, 0, 1, 1], [], []>} : vector<8x32xf32>, vector<32x128xf32>, vector<8x128xf32> -> vector<8x128xf32>
    %cst_61 = arith.constant dense<0.000000e+00> : vector<8x128xf32>
    %163 = tpu.matmul %156, %4, %cst_61 {dimension_numbers = #tpu.dot_dimension_numbers<[1], [0], [0], [1], [0, 0, 1, 1], [], []>} : vector<8x32xf32>, vector<32x128xf32>, vector<8x128xf32> -> vector<8x128xf32>
    %164 = arith.addf %162, %163 : vector<8x128xf32>
    %165 = arith.addf %164, %7 : vector<8x128xf32>
    %166 = vector.extract_strided_slice %165 {offsets = [0, 0], sizes = [8, 96], strides = [1, 1]} : vector<8x128xf32> to vector<8x96xf32>
    %167 = arith.negf %166 : vector<8x96xf32>
    %168 = math.exp %167 : vector<8x96xf32>
    %cst_62 = arith.constant 1.000000e+00 : f32
    %169 = vector.broadcast %cst_62 : f32 to vector<8x96xf32>
    %170 = arith.addf %169, %168 : vector<8x96xf32>
    %171 = arith.divf %169, %170 : vector<8x96xf32>
    %172 = vector.extract_strided_slice %165 {offsets = [0, 96], sizes = [8, 32], strides = [1, 1]} : vector<8x128xf32> to vector<8x32xf32>
    %173 = math.tanh %172 : vector<8x32xf32>
    %174 = vector.extract_strided_slice %171 {offsets = [0, 0], sizes = [8, 32], strides = [1, 1]} : vector<8x96xf32> to vector<8x32xf32>
    %175 = vector.extract_strided_slice %171 {offsets = [0, 32], sizes = [8, 32], strides = [1, 1]} : vector<8x96xf32> to vector<8x32xf32>
    %176 = vector.extract_strided_slice %171 {offsets = [0, 64], sizes = [8, 32], strides = [1, 1]} : vector<8x96xf32> to vector<8x32xf32>
    %177 = arith.mulf %175, %154 : vector<8x32xf32>
    %178 = arith.mulf %174, %173 : vector<8x32xf32>
    %179 = arith.addf %177, %178 : vector<8x32xf32>
    %180 = math.tanh %179 : vector<8x32xf32>
    %181 = arith.mulf %176, %180 : vector<8x32xf32>
    %c6_63 = arith.constant 6 : index
    %c0_64 = arith.constant 0 : index
    %c0_65 = arith.constant 0 : index
    %182 = vector.load %arg7[%c6_63, %c0_64, %c0_65] : memref<8x8x32xf32, #tpu.memory_space<vmem>>, vector<1x8x32xf32>
    %183 = vector.shape_cast %182 : vector<1x8x32xf32> to vector<8x32xf32>
    %184 = vector.shape_cast %181 : vector<8x32xf32> to vector<1x8x32xf32>
    tpu.vector_store %arg7[%c6_63, %c0_64, %c0_65], %184 {strides = array<i32>} : memref<8x8x32xf32, #tpu.memory_space<vmem>>, vector<1x8x32xf32>,
    %c7 = arith.constant 7 : index
    %c0_66 = arith.constant 0 : index
    %c0_67 = arith.constant 0 : index
    %185 = vector.load %arg1[%c7, %c0_66, %c0_67] : memref<8x8x32xf32, #tpu.memory_space<vmem>>, vector<1x8x32xf32>
    %186 = vector.shape_cast %185 : vector<1x8x32xf32> to vector<8x32xf32>
    %cst_68 = arith.constant dense<0.000000e+00> : vector<8x128xf32>
    %187 = tpu.matmul %186, %3, %cst_68 {dimension_numbers = #tpu.dot_dimension_numbers<[1], [0], [0], [1], [0, 0, 1, 1], [], []>} : vector<8x32xf32>, vector<32x128xf32>, vector<8x128xf32> -> vector<8x128xf32>
    %cst_69 = arith.constant dense<0.000000e+00> : vector<8x128xf32>
    %188 = tpu.matmul %181, %4, %cst_69 {dimension_numbers = #tpu.dot_dimension_numbers<[1], [0], [0], [1], [0, 0, 1, 1], [], []>} : vector<8x32xf32>, vector<32x128xf32>, vector<8x128xf32> -> vector<8x128xf32>
    %189 = arith.addf %187, %188 : vector<8x128xf32>
    %190 = arith.addf %189, %7 : vector<8x128xf32>
    %191 = vector.extract_strided_slice %190 {offsets = [0, 0], sizes = [8, 96], strides = [1, 1]} : vector<8x128xf32> to vector<8x96xf32>
    %192 = arith.negf %191 : vector<8x96xf32>
    %193 = math.exp %192 : vector<8x96xf32>
    %cst_70 = arith.constant 1.000000e+00 : f32
    %194 = vector.broadcast %cst_70 : f32 to vector<8x96xf32>
    %195 = arith.addf %194, %193 : vector<8x96xf32>
    %196 = arith.divf %194, %195 : vector<8x96xf32>
    %197 = vector.extract_strided_slice %190 {offsets = [0, 96], sizes = [8, 32], strides = [1, 1]} : vector<8x128xf32> to vector<8x32xf32>
    %198 = math.tanh %197 : vector<8x32xf32>
    %199 = vector.extract_strided_slice %196 {offsets = [0, 0], sizes = [8, 32], strides = [1, 1]} : vector<8x96xf32> to vector<8x32xf32>
    %200 = vector.extract_strided_slice %196 {offsets = [0, 32], sizes = [8, 32], strides = [1, 1]} : vector<8x96xf32> to vector<8x32xf32>
    %201 = vector.extract_strided_slice %196 {offsets = [0, 64], sizes = [8, 32], strides = [1, 1]} : vector<8x96xf32> to vector<8x32xf32>
    %202 = arith.mulf %200, %179 : vector<8x32xf32>
    %203 = arith.mulf %199, %198 : vector<8x32xf32>
    %204 = arith.addf %202, %203 : vector<8x32xf32>
    %205 = math.tanh %204 : vector<8x32xf32>
    %206 = arith.mulf %201, %205 : vector<8x32xf32>
    %c7_71 = arith.constant 7 : index
    %c0_72 = arith.constant 0 : index
    %c0_73 = arith.constant 0 : index
    %207 = vector.load %arg7[%c7_71, %c0_72, %c0_73] : memref<8x8x32xf32, #tpu.memory_space<vmem>>, vector<1x8x32xf32>
    %208 = vector.shape_cast %207 : vector<1x8x32xf32> to vector<8x32xf32>
    %209 = vector.shape_cast %206 : vector<8x32xf32> to vector<1x8x32xf32>
    tpu.vector_store %arg7[%c7_71, %c0_72, %c0_73], %209 {strides = array<i32>} : memref<8x8x32xf32, #tpu.memory_space<vmem>>, vector<1x8x32xf32>,
    %c0_74 = arith.constant 0 : index
    %c0_75 = arith.constant 0 : index
    %210 = vector.load %arg10[%c0_74, %c0_75] : memref<8x32xf32, #tpu.memory_space<vmem>>, vector<8x32xf32>
    tpu.vector_store %arg10[%c0_74, %c0_75], %206 {strides = array<i32>} : memref<8x32xf32, #tpu.memory_space<vmem>>, vector<8x32xf32>,
    %c0_76 = arith.constant 0 : index
    %c0_77 = arith.constant 0 : index
    %211 = vector.load %arg11[%c0_76, %c0_77] : memref<8x32xf32, #tpu.memory_space<vmem>>, vector<8x32xf32>
    tpu.vector_store %arg11[%c0_76, %c0_77], %204 {strides = array<i32>} : memref<8x32xf32, #tpu.memory_space<vmem>>, vector<8x32xf32>,
    %c0_i32_78 = arith.constant 0 : i32
    %212 = arith.cmpi eq, %arg0, %c0_i32_78 : i32
    %213 = arith.extui %212 : i1 to i32
    %c0_i32_79 = arith.constant 0 : i32
    %214 = arith.cmpi ne, %213, %c0_i32_79 : i32
    scf.if %214 {
      %c0_80 = arith.constant 0 : index
      %c0_81 = arith.constant 0 : index
      %215 = vector.load %arg8[%c0_80, %c0_81] : memref<8x32xf32, #tpu.memory_space<vmem>>, vector<8x32xf32>
      tpu.vector_store %arg8[%c0_80, %c0_81], %206 {strides = array<i32>} : memref<8x32xf32, #tpu.memory_space<vmem>>, vector<8x32xf32>,
      %c0_82 = arith.constant 0 : index
      %c0_83 = arith.constant 0 : index
      %216 = vector.load %arg9[%c0_82, %c0_83] : memref<8x32xf32, #tpu.memory_space<vmem>>, vector<8x32xf32>
      tpu.vector_store %arg9[%c0_82, %c0_83], %204 {strides = array<i32>} : memref<8x32xf32, #tpu.memory_space<vmem>>, vector<8x32xf32>,
    } else {
    }
    return
  }
  func.func @transform_0(%arg0: i32) -> (i32, i32, i32) {
    %c0_i32 = arith.constant 0 : i32
    %c0_i32_0 = arith.constant 0 : i32
    %c0_i32_1 = arith.constant 0 : i32
    return %arg0, %c0_i32, %c0_i32_0 : i32, i32, i32
  }
  func.func @transform_1(%arg0: i32) -> (i32, i32) {
    %c0_i32 = arith.constant 0 : i32
    %c0_i32_0 = arith.constant 0 : i32
    %c0_i32_1 = arith.constant 0 : i32
    return %c0_i32, %c0_i32_0 : i32, i32
  }
  func.func @transform_2(%arg0: i32) -> (i32, i32) {
    %c0_i32 = arith.constant 0 : i32
    %c0_i32_0 = arith.constant 0 : i32
    %c0_i32_1 = arith.constant 0 : i32
    return %c0_i32, %c0_i32_0 : i32, i32
  }
  func.func @transform_3(%arg0: i32) -> (i32, i32) {
    %c0_i32 = arith.constant 0 : i32
    %c0_i32_0 = arith.constant 0 : i32
    %c0_i32_1 = arith.constant 0 : i32
    return %c0_i32, %c0_i32_0 : i32, i32
  }
  func.func @transform_4(%arg0: i32) -> (i32, i32) {
    %c0_i32 = arith.constant 0 : i32
    %c0_i32_0 = arith.constant 0 : i32
    %c0_i32_1 = arith.constant 0 : i32
    return %c0_i32, %c0_i32_0 : i32, i32
  }
  func.func @transform_5(%arg0: i32) -> (i32, i32) {
    %c0_i32 = arith.constant 0 : i32
    %c0_i32_0 = arith.constant 0 : i32
    %c0_i32_1 = arith.constant 0 : i32
    return %c0_i32, %c0_i32_0 : i32, i32
  }
  func.func @transform_6(%arg0: i32) -> (i32, i32, i32) {
    %c0_i32 = arith.constant 0 : i32
    %c0_i32_0 = arith.constant 0 : i32
    %c0_i32_1 = arith.constant 0 : i32
    return %arg0, %c0_i32, %c0_i32_0 : i32, i32, i32
  }
  func.func @transform_7(%arg0: i32) -> (i32, i32) {
    %c0_i32 = arith.constant 0 : i32
    %c0_i32_0 = arith.constant 0 : i32
    %c0_i32_1 = arith.constant 0 : i32
    return %c0_i32, %c0_i32_0 : i32, i32
  }
  func.func @transform_8(%arg0: i32) -> (i32, i32) {
    %c0_i32 = arith.constant 0 : i32
    %c0_i32_0 = arith.constant 0 : i32
    %c0_i32_1 = arith.constant 0 : i32
    return %c0_i32, %c0_i32_0 : i32, i32
  }
}

</mosaic_0001>

<llo_original>
// kernel: tpu_custom_call.1
$region0: #{tpu_custom_call.1}
  #allocation0 [shape = 'u32[]', space=smem, size = 0x4, offset = 0x4, fixed_abs, tag = 'smem constant byte address 0x4 - core index']
  #allocation1 [shape = 'u32[144,128]{1,0:T(1,128)}', space=vmem, size = 0x12000, scoped, tag = 'internal scratch']
  #allocation2 [shape = 'f32[8,32]{1,0:T(8,128)}', space=vmem, size = 0x1000, scoped, tag = 'scratch operand']
  #allocation3 [shape = 'f32[8,32]{1,0:T(8,128)}', space=vmem, size = 0x1000, scoped, tag = 'scratch operand']
  %s0 = inlined_call_operand.hbm [shape: f32[8,8,32], index: 0, kind: input, shape index: {}]
  %s1 = inlined_call_operand.hbm [shape: f32[8,32], index: 1, kind: input, shape index: {}]
  %s2 = inlined_call_operand.hbm [shape: f32[8,32], index: 2, kind: input, shape index: {}]
  %s3 = inlined_call_operand.hbm [shape: f32[32,128], index: 3, kind: input, shape index: {}]
  %s4 = inlined_call_operand.hbm [shape: f32[32,128], index: 4, kind: input, shape index: {}]
  %s5 = inlined_call_operand.vmem [shape: f32[1,128], index: 5, kind: input, shape index: {}]
  %s6 = inlined_call_operand.hbm [shape: f32[8,8,32], index: 6, kind: output, shape index: {0}]
  %s7 = inlined_call_operand.hbm [shape: f32[8,32], index: 7, kind: output, shape index: {1}]
  %s8 = inlined_call_operand.hbm [shape: f32[8,32], index: 8, kind: output, shape index: {2}]
  %9 = xla_tuple %s6, %s7, %s8
  %s10 = sld [smem:[#allocation0]]
  $region78: #{tpu_custom_call.1} parent=0
    _
  %s12 = ssub.s32 1, %s10
  %s13 = scalar_select 0, %s12, %s10
  $region1: #{tpu_custom_call.1} parent=0
    #allocation4 [shape = 'u8[32768]{0}', space=vmem, size = 0x8000, scoped, tag = 'input window, operand 0, single buffered']
    #allocation5 [shape = 's32[1]{0}', space=sflag, size = 0x4, scoped, tag = 'scoped memory for tpu_custom_call.1']
    #allocation6 [shape = 's32[1]{0}', space=sflag, size = 0x4, scoped, tag = 'scoped memory for tpu_custom_call.1']
    #allocation7 [shape = 'u8[4096]{0}', space=vmem, size = 0x1000, scoped, tag = 'input window, operand 1, single buffered']
    #allocation8 [shape = 's32[1]{0}', space=sflag, size = 0x4, scoped, tag = 'scoped memory for tpu_custom_call.1']
    #allocation9 [shape = 'u8[4096]{0}', space=vmem, size = 0x1000, scoped, tag = 'input window, operand 2, single buffered']
    #allocation10 [shape = 'u8[16384]{0}', space=vmem, size = 0x4000, scoped, tag = 'input window, operand 3, single buffered']
    #allocation11 [shape = 's32[1]{0}', space=sflag, size = 0x4, scoped, tag = 'scoped memory for tpu_custom_call.1']
    #allocation12 [shape = 'u8[16384]{0}', space=vmem, size = 0x4000, scoped, tag = 'input window, operand 4, single buffered']
    #allocation13 [shape = 'u8[32768]{0}', space=vmem, size = 0x8000, scoped, tag = 'output window, operand 0, single buffered']
    #allocation14 [shape = 'u8[4096]{0}', space=vmem, size = 0x1000, scoped, tag = 'output window, operand 1, single buffered']
    #allocation15 [shape = 's32[1]{0}', space=sflag, size = 0x4, scoped, tag = 'scoped memory for tpu_custom_call.1']
    #allocation16 [shape = 'u8[4096]{0}', space=vmem, size = 0x1000, scoped, tag = 'output window, operand 2, single buffered']
    %14 = vsyncpa [#allocation5], 0
    %15 = vsyncpa [#allocation8], 0
    %16 = vsyncpa [#allocation11], 0
    %17 = vsyncpa [#allocation6], 0
    %18 = vsyncpa [#allocation15], 0
    // Predicated region
    $region2: #{tpu_custom_call.1} parent=1 // pred_check
      _
    $region3: #{tpu_custom_call.1} parent=1 // pred_check_branch
      %20 = sbr.rel (0) target = $region5
    $region4: #{tpu_custom_call.1} parent=1 // pred_region
      %s22 = ssub.s32 1024, 1024
      %23 = vsyncadd [#allocation5], %s22
      %s24 = sshll.u32 [#allocation4], 4
      %s25 = int_to_ptr.vmem [resolvable:$true] %s24
      %30 = dma.hbm_to_vmem [thread:$0]  %s0, 1024, %s25, [#allocation5], 128, 128, 8
    $region5: #{tpu_custom_call.1} parent=1 // pred_fallthru
      _
    // Predicated region
    $region6: #{tpu_custom_call.1} parent=1 // pred_check
      _
    $region7: #{tpu_custom_call.1} parent=1 // pred_check_branch
      %32 = sbr.rel (0) target = $region9
    $region8: #{tpu_custom_call.1} parent=1 // pred_region
      %s34 = ssub.s32 128, 128
      %35 = vsyncadd [#allocation8], %s34
      %s37 = sshll.u32 [#allocation7], 4
      %s38 = int_to_ptr.vmem [resolvable:$true] %s37
      %40 = dma.hbm_to_vmem [thread:$0]  %s1, 128, %s38, [#allocation8]
    $region9: #{tpu_custom_call.1} parent=1 // pred_fallthru
      _
    // Predicated region
    $region10: #{tpu_custom_call.1} parent=1 // pred_check
      _
    $region11: #{tpu_custom_call.1} parent=1 // pred_check_branch
      %42 = sbr.rel (0) target = $region13
    $region12: #{tpu_custom_call.1} parent=1 // pred_region
      %s44 = ssub.s32 128, 128
      %45 = vsyncadd [#allocation8], %s44
      %s47 = sshll.u32 [#allocation9], 4
      %s48 = int_to_ptr.vmem [resolvable:$true] %s47
      %50 = dma.hbm_to_vmem [thread:$0]  %s2, 128, %s48, [#allocation8]
    $region13: #{tpu_custom_call.1} parent=1 // pred_fallthru
      _
    // Predicated region
    $region14: #{tpu_custom_call.1} parent=1 // pred_check
      _
    $region15: #{tpu_custom_call.1} parent=1 // pred_check_branch
      %52 = sbr.rel (0) target = $region17
    $region16: #{tpu_custom_call.1} parent=1 // pred_region
      %s54 = ssub.s32 512, 512
      %55 = vsyncadd [#allocation11], %s54
      %s56 = sshll.u32 [#allocation10], 4
      %s57 = int_to_ptr.vmem [resolvable:$true] %s56
      %62 = dma.hbm_to_vmem [thread:$0]  %s3, 512, %s57, [#allocation11], 128, 128, 8
    $region17: #{tpu_custom_call.1} parent=1 // pred_fallthru
      _
    // Predicated region
    $region18: #{tpu_custom_call.1} parent=1 // pred_check
      _
    $region19: #{tpu_custom_call.1} parent=1 // pred_check_branch
      %64 = sbr.rel (0) target = $region21
    $region20: #{tpu_custom_call.1} parent=1 // pred_region
      %s66 = ssub.s32 512, 512
      %67 = vsyncadd [#allocation11], %s66
      %s68 = sshll.u32 [#allocation12], 4
      %s69 = int_to_ptr.vmem [resolvable:$true] %s68
      %74 = dma.hbm_to_vmem [thread:$0]  %s4, 512, %s69, [#allocation11], 128, 128, 8
    $region21: #{tpu_custom_call.1} parent=1 // pred_fallthru
      _
    // Predicated region
    $region22: #{tpu_custom_call.1} parent=1 // pred_check
      _
    $region23: #{tpu_custom_call.1} parent=1 // pred_check_branch
      %76 = sbr.rel (0) target = $region25
    $region24: #{tpu_custom_call.1} parent=1 // pred_region
      _
    $region25: #{tpu_custom_call.1} parent=1 // pred_fallthru
      _
    // Predicated region
    $region26: #{tpu_custom_call.1} parent=1 // pred_check
      _
    $region27: #{tpu_custom_call.1} parent=1 // pred_check_branch
      %78 = sbr.rel (0) target = $region29
    $region28: #{tpu_custom_call.1} parent=1 // pred_region
      %79 = dma.done [#allocation5], 1024
    $region29: #{tpu_custom_call.1} parent=1 // pred_fallthru
      _
    // Predicated region
    $region30: #{tpu_custom_call.1} parent=1 // pred_check
      _
    $region31: #{tpu_custom_call.1} parent=1 // pred_check_branch
      %81 = sbr.rel (0) target = $region33
    $region32: #{tpu_custom_call.1} parent=1 // pred_region
      %82 = dma.done [#allocation8], 128
    $region33: #{tpu_custom_call.1} parent=1 // pred_fallthru
      _
    // Predicated region
    $region34: #{tpu_custom_call.1} parent=1 // pred_check
      _
    $region35: #{tpu_custom_call.1} parent=1 // pred_check_branch
      %84 = sbr.rel (0) target = $region37
    $region36: #{tpu_custom_call.1} parent=1 // pred_region
      %85 = dma.done [#allocation8], 128
    $region37: #{tpu_custom_call.1} parent=1 // pred_fallthru
      _
    // Predicated region
    $region38: #{tpu_custom_call.1} parent=1 // pred_check
      _
    $region39: #{tpu_custom_call.1} parent=1 // pred_check_branch
      %87 = sbr.rel (0) target = $region41
    $region40: #{tpu_custom_call.1} parent=1 // pred_region
      %88 = dma.done [#allocation11], 512
    $region41: #{tpu_custom_call.1} parent=1 // pred_fallthru
      _
    // Predicated region
    $region42: #{tpu_custom_call.1} parent=1 // pred_check
      _
    $region43: #{tpu_custom_call.1} parent=1 // pred_check_branch
      %90 = sbr.rel (0) target = $region45
    $region44: #{tpu_custom_call.1} parent=1 // pred_region
      %91 = dma.done [#allocation11], 512
    $region45: #{tpu_custom_call.1} parent=1 // pred_fallthru
      _
    %p92 = scmp.eq.s32.totalorder 0, 0
    // Predicated region
    $region46: #{tpu_custom_call.1} parent=1 // pred_check
      %p93 = pneg %p92
    $region47: #{tpu_custom_call.1} parent=1 // pred_check_branch
      %95 = sbr.rel (%p93) target = $region49
    $region48: #{tpu_custom_call.1} parent=1 // pred_region
      %v96 = vld [vmem:[#allocation7] sm:$0xff]
      %vm97 = vcmask 261120
      %98 = vst.msk [vmem:[#allocation2] sm:$0xff] %vm97, %v96
      %v99 = vld [vmem:[#allocation9] sm:$0xff]
      %100 = vst.msk [vmem:[#allocation3] sm:$0xff] %vm97, %v99
    $region49: #{tpu_custom_call.1} parent=1 // pred_fallthru
      _
    %v101 = vld [vmem:[#allocation10] sm:$0xff]
    %v102 = vld [vmem:[#allocation10 + $0x8] sm:$0xff]
    %v103 = vld [vmem:[#allocation10 + $0x10] sm:$0xff]
    %v104 = vld [vmem:[#allocation10 + $0x18] sm:$0xff]
    %v105 = vld [vmem:[#allocation12] sm:$0xff]
    %v106 = vld [vmem:[#allocation12 + $0x8] sm:$0xff]
    %v107 = vld [vmem:[#allocation12 + $0x10] sm:$0xff]
    %v108 = vld [vmem:[#allocation12 + $0x18] sm:$0xff]
    %v109 = vld [vmem:[%s5] sm:$0x1]
    %v111 = vlaneseq
    %v112 = vshrl.u32 %v111, 7
    %v113 = vsub.s32 0, %v112
    %v114 = vrot.slane %v109, %v113
    %v116 = vld [vmem:[#allocation2] sm:$0xff]
    %v117 = vld [vmem:[#allocation3] sm:$0xff]
    %v118 = vld [vmem:[#allocation4] sm:$0xff]
    %vm119 = vcmask 261120
    %v121 = vsel %vm119, %v116, 0
    %123 = vmatprep.subr.mxu0 0.0
    %124 = vmatpush1.msra.mxu0 0.0
    %125 = vmatprep.subr.mxu0 0.0
    %126 = vmatpush1.msra.mxu0 0.0
    %127 = vmatprep.subr.mxu0 0.0
    %128 = vmatpush1.msra.mxu0 0.0
    %129 = vmatprep.subr.mxu0 0.0
    %130 = vmatpush1.msra.mxu0 0.0
    %131 = vmatprep.subr.mxu0 0.0
    %132 = vmatpush1.msra.mxu0 0.0
    %133 = vmatprep.subr.mxu0 0.0
    %134 = vmatpush1.msra.mxu0 0.0
    %135 = vmatprep.subr.mxu0 0.0
    %136 = vmatpush1.msra.mxu0 0.0
    %137 = vmatprep.subr.mxu0 0.0
    %138 = vmatpush1.msra.mxu0 0.0
    %139 = vmatprep.subr.mxu0 0.0
    %140 = vmatpush1.msra.mxu0 0.0
    %141 = vmatprep.subr.mxu0 0.0
    %142 = vmatpush1.msra.mxu0 0.0
    %143 = vmatprep.subr.mxu0 0.0
    %144 = vmatpush1.msra.mxu0 0.0
    %145 = vmatprep.subr.mxu0 0.0
    %146 = vmatpush1.msra.mxu0 0.0
    %147 = vmatprep.subr.mxu0 0.0
    %148 = vmatpush1.msra.mxu0 %v108
    %149 = vmatprep.subr.mxu0 0.0
    %150 = vmatpush1.msra.mxu0 %v107
    %151 = vmatprep.subr.mxu0 0.0
    %152 = vmatpush1.msra.mxu0 %v106
    %153 = vmatprep.subr.mxu0 0.0
    %154 = vmatpush1.msra.mxu0 %v105
    %155 = vmatprep.subr.mxu0 0.0
    %156 = vmatpush2.msra.mxu0 0.0
    %157 = vmatprep.subr.mxu0 0.0
    %158 = vmatpush2.msra.mxu0 0.0
    %159 = vmatprep.subr.mxu0 0.0
    %160 = vmatpush2.msra.mxu0 0.0
    %161 = vmatprep.subr.mxu0 0.0
    %162 = vmatpush2.msra.mxu0 0.0
    %163 = vmatprep.subr.mxu0 0.0
    %164 = vmatpush2.msra.mxu0 0.0
    %165 = vmatprep.subr.mxu0 0.0
    %166 = vmatpush2.msra.mxu0 0.0
    %167 = vmatprep.subr.mxu0 0.0
    %168 = vmatpush2.msra.mxu0 0.0
    %169 = vmatprep.subr.mxu0 0.0
    %170 = vmatpush2.msra.mxu0 0.0
    %171 = vmatprep.subr.mxu0 0.0
    %172 = vmatpush2.msra.mxu0 0.0
    %173 = vmatprep.subr.mxu0 0.0
    %174 = vmatpush2.msra.mxu0 0.0
    %175 = vmatprep.subr.mxu0 0.0
    %176 = vmatpush2.msra.mxu0 0.0
    %177 = vmatprep.subr.mxu0 0.0
    %178 = vmatpush2.msra.mxu0 0.0
    %179 = vmatprep.subr.mxu0 0.0
    %180 = vmatpush2.msra.mxu0 0.0
    %181 = vmatprep.subr.mxu0 0.0
    %182 = vmatpush2.msra.mxu0 0.0
    %183 = vmatprep.subr.mxu0 0.0
    %184 = vmatpush2.msra.mxu0 0.0
    %185 = vmatprep.subr.mxu0 0.0
    %186 = vmatpush2.msra.mxu0 0.0
    %187 = vmatprep.mubr.f32.mxu0 0.0
    %188 = vmatmul.mubr.f32.gmra.mxu0 %v121
    %v189 = vpop.f32.mrf.mxu0
    %v190 = vadd.f32 0.0, %v189
    %v191 = vpop.f32.mrf.mxu0
    %192 = vdwg.mxu0
    %v194 = vsel %vm119, %v118, 0
    %196 = vmatprep.subr.mxu0 0.0
    %197 = vmatpush1.msra.mxu0 0.0
    %198 = vmatprep.subr.mxu0 0.0
    %199 = vmatpush1.msra.mxu0 0.0
    %200 = vmatprep.subr.mxu0 0.0
    %201 = vmatpush1.msra.mxu0 0.0
    %202 = vmatprep.subr.mxu0 0.0
    %203 = vmatpush1.msra.mxu0 0.0
    %204 = vmatprep.subr.mxu0 0.0
    %205 = vmatpush1.msra.mxu0 0.0
    %206 = vmatprep.subr.mxu0 0.0
    %207 = vmatpush1.msra.mxu0 0.0
    %208 = vmatprep.subr.mxu0 0.0
    %209 = vmatpush1.msra.mxu0 0.0
    %210 = vmatprep.subr.mxu0 0.0
    %211 = vmatpush1.msra.mxu0 0.0
    %212 = vmatprep.subr.mxu0 0.0
    %213 = vmatpush1.msra.mxu0 0.0
    %214 = vmatprep.subr.mxu0 0.0
    %215 = vmatpush1.msra.mxu0 0.0
    %216 = vmatprep.subr.mxu0 0.0
    %217 = vmatpush1.msra.mxu0 0.0
    %218 = vmatprep.subr.mxu0 0.0
    %219 = vmatpush1.msra.mxu0 0.0
    %220 = vmatprep.subr.mxu0 0.0
    %221 = vmatpush1.msra.mxu0 %v104
    %222 = vmatprep.subr.mxu0 0.0
    %223 = vmatpush1.msra.mxu0 %v103
    %224 = vmatprep.subr.mxu0 0.0
    %225 = vmatpush1.msra.mxu0 %v102
    %226 = vmatprep.subr.mxu0 0.0
    %227 = vmatpush1.msra.mxu0 %v101
    %228 = vmatprep.subr.mxu0 0.0
    %229 = vmatpush2.msra.mxu0 0.0
    %230 = vmatprep.subr.mxu0 0.0
    %231 = vmatpush2.msra.mxu0 0.0
    %232 = vmatprep.subr.mxu0 0.0
    %233 = vmatpush2.msra.mxu0 0.0
    %234 = vmatprep.subr.mxu0 0.0
    %235 = vmatpush2.msra.mxu0 0.0
    %236 = vmatprep.subr.mxu0 0.0
    %237 = vmatpush2.msra.mxu0 0.0
    %238 = vmatprep.subr.mxu0 0.0
    %239 = vmatpush2.msra.mxu0 0.0
    %240 = vmatprep.subr.mxu0 0.0
    %241 = vmatpush2.msra.mxu0 0.0
    %242 = vmatprep.subr.mxu0 0.0
    %243 = vmatpush2.msra.mxu0 0.0
    %244 = vmatprep.subr.mxu0 0.0
    %245 = vmatpush2.msra.mxu0 0.0
    %246 = vmatprep.subr.mxu0 0.0
    %247 = vmatpush2.msra.mxu0 0.0
    %248 = vmatprep.subr.mxu0 0.0
    %249 = vmatpush2.msra.mxu0 0.0
    %250 = vmatprep.subr.mxu0 0.0
    %251 = vmatpush2.msra.mxu0 0.0
    %252 = vmatprep.subr.mxu0 0.0
    %253 = vmatpush2.msra.mxu0 0.0
    %254 = vmatprep.subr.mxu0 0.0
    %255 = vmatpush2.msra.mxu0 0.0
    %256 = vmatprep.subr.mxu0 0.0
    %257 = vmatpush2.msra.mxu0 0.0
    %258 = vmatprep.subr.mxu0 0.0
    %259 = vmatpush2.msra.mxu0 0.0
    %260 = vmatprep.mubr.f32.mxu0 0.0
    %261 = vmatmul.mubr.f32.gmra.mxu0 %v194
    %v262 = vpop.f32.mrf.mxu0
    %v263 = vadd.f32 %v190, %v262
    %v264 = vpop.f32.mrf.mxu0
    %265 = vdwg.mxu0
    %v266 = vadd.f32 %v263, %v114
    %v267 = vxor.u32 %v266, 2147483648
    %v268 = vmul.f32 %v267, 1.442695
    %v269 = vpow.pop %v268
    %v270 = vadd.f32 %v269, 1.0
    %v271 = vrcp.pop %v270
    %v272 = vmul.f32 1.0, %v271
    %v273 = vtanh.pop %v266
    %275 = vrot.lane.b32.xlu0 %v117, 32
    %v276 = vpop.permute.xlu0 %275
    %v278 = vmul.f32 %v272, %v276
    %280 = vrot.lane.b32.xlu0 %v273, 32
    %v281 = vpop.permute.xlu0 %280
    %v283 = vmul.f32 %v272, %v281
    %285 = vrot.lane.b32.xlu0 %v283, 32
    %v286 = vpop.permute.xlu0 %285
    %v288 = vadd.f32 %v278, %v286
    %v289 = vtanh.pop %v288
    %291 = vrot.lane.b32.xlu0 %v289, 32
    %v292 = vpop.permute.xlu0 %291
    %v294 = vmul.f32 %v272, %v292
    %296 = vrot.lane.b32.xlu0 %v294, 64
    %v297 = vpop.permute.xlu0 %296
    %299 = vst.msk [vmem:[#allocation13] sm:$0xff] %vm119, %v297
    %s300 = scalar_lea.vmem [#allocation4], 8
    %v301 = vld [vmem:[%s300] sm:$0xff]
    %v302 = vsel %vm119, %v297, 0
    %304 = vmatprep.subr.mxu0 0.0
    %305 = vmatpush1.msra.mxu0 0.0
    %306 = vmatprep.subr.mxu0 0.0
    %307 = vmatpush1.msra.mxu0 0.0
    %308 = vmatprep.subr.mxu0 0.0
    %309 = vmatpush1.msra.mxu0 0.0
    %310 = vmatprep.subr.mxu0 0.0
    %311 = vmatpush1.msra.mxu0 0.0
    %312 = vmatprep.subr.mxu0 0.0
    %313 = vmatpush1.msra.mxu0 0.0
    %314 = vmatprep.subr.mxu0 0.0
    %315 = vmatpush1.msra.mxu0 0.0
    %316 = vmatprep.subr.mxu0 0.0
    %317 = vmatpush1.msra.mxu0 0.0
    %318 = vmatprep.subr.mxu0 0.0
    %319 = vmatpush1.msra.mxu0 0.0
    %320 = vmatprep.subr.mxu0 0.0
    %321 = vmatpush1.msra.mxu0 0.0
    %322 = vmatprep.subr.mxu0 0.0
    %323 = vmatpush1.msra.mxu0 0.0
    %324 = vmatprep.subr.mxu0 0.0
    %325 = vmatpush1.msra.mxu0 0.0
    %326 = vmatprep.subr.mxu0 0.0
    %327 = vmatpush1.msra.mxu0 0.0
    %328 = vmatprep.subr.mxu0 0.0
    %329 = vmatpush1.msra.mxu0 %v108
    %330 = vmatprep.subr.mxu0 0.0
    %331 = vmatpush1.msra.mxu0 %v107
    %332 = vmatprep.subr.mxu0 0.0
    %333 = vmatpush1.msra.mxu0 %v106
    %334 = vmatprep.subr.mxu0 0.0
    %335 = vmatpush1.msra.mxu0 %v105
    %336 = vmatprep.subr.mxu0 0.0
    %337 = vmatpush2.msra.mxu0 0.0
    %338 = vmatprep.subr.mxu0 0.0
    %339 = vmatpush2.msra.mxu0 0.0
    %340 = vmatprep.subr.mxu0 0.0
    %341 = vmatpush2.msra.mxu0 0.0
    %342 = vmatprep.subr.mxu0 0.0
    %343 = vmatpush2.msra.mxu0 0.0
    %344 = vmatprep.subr.mxu0 0.0
    %345 = vmatpush2.msra.mxu0 0.0
    %346 = vmatprep.subr.mxu0 0.0
    %347 = vmatpush2.msra.mxu0 0.0
    %348 = vmatprep.subr.mxu0 0.0
    %349 = vmatpush2.msra.mxu0 0.0
    %350 = vmatprep.subr.mxu0 0.0
    %351 = vmatpush2.msra.mxu0 0.0
    %352 = vmatprep.subr.mxu0 0.0
    %353 = vmatpush2.msra.mxu0 0.0
    %354 = vmatprep.subr.mxu0 0.0
    %355 = vmatpush2.msra.mxu0 0.0
    %356 = vmatprep.subr.mxu0 0.0
    %357 = vmatpush2.msra.mxu0 0.0
    %358 = vmatprep.subr.mxu0 0.0
    %359 = vmatpush2.msra.mxu0 0.0
    %360 = vmatprep.subr.mxu0 0.0
    %361 = vmatpush2.msra.mxu0 0.0
    %362 = vmatprep.subr.mxu0 0.0
    %363 = vmatpush2.msra.mxu0 0.0
    %364 = vmatprep.subr.mxu0 0.0
    %365 = vmatpush2.msra.mxu0 0.0
    %366 = vmatprep.subr.mxu0 0.0
    %367 = vmatpush2.msra.mxu0 0.0
    %368 = vmatprep.mubr.f32.mxu0 0.0
    %369 = vmatmul.mubr.f32.gmra.mxu0 %v302
    %v370 = vpop.f32.mrf.mxu0
    %v371 = vadd.f32 0.0, %v370
    %v372 = vpop.f32.mrf.mxu0
    %373 = vdwg.mxu0
    %v375 = vsel %vm119, %v301, 0
    %377 = vmatprep.subr.mxu0 0.0
    %378 = vmatpush1.msra.mxu0 0.0
    %379 = vmatprep.subr.mxu0 0.0
    %380 = vmatpush1.msra.mxu0 0.0
    %381 = vmatprep.subr.mxu0 0.0
    %382 = vmatpush1.msra.mxu0 0.0
    %383 = vmatprep.subr.mxu0 0.0
    %384 = vmatpush1.msra.mxu0 0.0
    %385 = vmatprep.subr.mxu0 0.0
    %386 = vmatpush1.msra.mxu0 0.0
    %387 = vmatprep.subr.mxu0 0.0
    %388 = vmatpush1.msra.mxu0 0.0
    %389 = vmatprep.subr.mxu0 0.0
    %390 = vmatpush1.msra.mxu0 0.0
    %391 = vmatprep.subr.mxu0 0.0
    %392 = vmatpush1.msra.mxu0 0.0
    %393 = vmatprep.subr.mxu0 0.0
    %394 = vmatpush1.msra.mxu0 0.0
    %395 = vmatprep.subr.mxu0 0.0
    %396 = vmatpush1.msra.mxu0 0.0
    %397 = vmatprep.subr.mxu0 0.0
    %398 = vmatpush1.msra.mxu0 0.0
    %399 = vmatprep.subr.mxu0 0.0
    %400 = vmatpush1.msra.mxu0 0.0
    %401 = vmatprep.subr.mxu0 0.0
    %402 = vmatpush1.msra.mxu0 %v104
    %403 = vmatprep.subr.mxu0 0.0
    %404 = vmatpush1.msra.mxu0 %v103
    %405 = vmatprep.subr.mxu0 0.0
    %406 = vmatpush1.msra.mxu0 %v102
    %407 = vmatprep.subr.mxu0 0.0
    %408 = vmatpush1.msra.mxu0 %v101
    %409 = vmatprep.subr.mxu0 0.0
    %410 = vmatpush2.msra.mxu0 0.0
    %411 = vmatprep.subr.mxu0 0.0
    %412 = vmatpush2.msra.mxu0 0.0
    %413 = vmatprep.subr.mxu0 0.0
    %414 = vmatpush2.msra.mxu0 0.0
    %415 = vmatprep.subr.mxu0 0.0
    %416 = vmatpush2.msra.mxu0 0.0
    %417 = vmatprep.subr.mxu0 0.0
    %418 = vmatpush2.msra.mxu0 0.0
    %419 = vmatprep.subr.mxu0 0.0
    %420 = vmatpush2.msra.mxu0 0.0
    %421 = vmatprep.subr.mxu0 0.0
    %422 = vmatpush2.msra.mxu0 0.0
    %423 = vmatprep.subr.mxu0 0.0
    %424 = vmatpush2.msra.mxu0 0.0
    %425 = vmatprep.subr.mxu0 0.0
    %426 = vmatpush2.msra.mxu0 0.0
    %427 = vmatprep.subr.mxu0 0.0
    %428 = vmatpush2.msra.mxu0 0.0
    %429 = vmatprep.subr.mxu0 0.0
    %430 = vmatpush2.msra.mxu0 0.0
    %431 = vmatprep.subr.mxu0 0.0
    %432 = vmatpush2.msra.mxu0 0.0
    %433 = vmatprep.subr.mxu0 0.0
    %434 = vmatpush2.msra.mxu0 0.0
    %435 = vmatprep.subr.mxu0 0.0
    %436 = vmatpush2.msra.mxu0 0.0
    %437 = vmatprep.subr.mxu0 0.0
    %438 = vmatpush2.msra.mxu0 0.0
    %439 = vmatprep.subr.mxu0 0.0
    %440 = vmatpush2.msra.mxu0 0.0
    %441 = vmatprep.mubr.f32.mxu0 0.0
    %442 = vmatmul.mubr.f32.gmra.mxu0 %v375
    %v443 = vpop.f32.mrf.mxu0
    %v444 = vadd.f32 %v371, %v443
    %v445 = vpop.f32.mrf.mxu0
    %446 = vdwg.mxu0
    %v447 = vadd.f32 %v444, %v114
    %v448 = vxor.u32 %v447, 2147483648
    %v449 = vmul.f32 %v448, 1.442695
    %v450 = vpow.pop %v449
    %v451 = vadd.f32 %v450, 1.0
    %v452 = vrcp.pop %v451
    %v453 = vmul.f32 1.0, %v452
    %v454 = vtanh.pop %v447
    %v455 = vmul.f32 %v453, %v288
    %457 = vrot.lane.b32.xlu0 %v454, 32
    %v458 = vpop.permute.xlu0 %457
    %v460 = vmul.f32 %v453, %v458
    %462 = vrot.lane.b32.xlu0 %v460, 32
    %v463 = vpop.permute.xlu0 %462
    %v465 = vadd.f32 %v455, %v463
    %v466 = vtanh.pop %v465
    %468 = vrot.lane.b32.xlu0 %v466, 32
    %v469 = vpop.permute.xlu0 %468
    %v471 = vmul.f32 %v453, %v469
    %473 = vrot.lane.b32.xlu0 %v471, 64
    %v474 = vpop.permute.xlu0 %473
    %s476 = scalar_lea.vmem [#allocation13], 8
    %477 = vst.msk [vmem:[%s476] sm:$0xff] %vm119, %v474
    %s478 = scalar_lea.vmem [#allocation4], 16
    %v479 = vld [vmem:[%s478] sm:$0xff]
    %v480 = vsel %vm119, %v474, 0
    %482 = vmatprep.subr.mxu0 0.0
    %483 = vmatpush1.msra.mxu0 0.0
    %484 = vmatprep.subr.mxu0 0.0
    %485 = vmatpush1.msra.mxu0 0.0
    %486 = vmatprep.subr.mxu0 0.0
    %487 = vmatpush1.msra.mxu0 0.0
    %488 = vmatprep.subr.mxu0 0.0
    %489 = vmatpush1.msra.mxu0 0.0
    %490 = vmatprep.subr.mxu0 0.0
    %491 = vmatpush1.msra.mxu0 0.0
    %492 = vmatprep.subr.mxu0 0.0
    %493 = vmatpush1.msra.mxu0 0.0
    %494 = vmatprep.subr.mxu0 0.0
    %495 = vmatpush1.msra.mxu0 0.0
    %496 = vmatprep.subr.mxu0 0.0
    %497 = vmatpush1.msra.mxu0 0.0
    %498 = vmatprep.subr.mxu0 0.0
    %499 = vmatpush1.msra.mxu0 0.0
    %500 = vmatprep.subr.mxu0 0.0
    %501 = vmatpush1.msra.mxu0 0.0
    %502 = vmatprep.subr.mxu0 0.0
    %503 = vmatpush1.msra.mxu0 0.0
    %504 = vmatprep.subr.mxu0 0.0
    %505 = vmatpush1.msra.mxu0 0.0
    %506 = vmatprep.subr.mxu0 0.0
    %507 = vmatpush1.msra.mxu0 %v108
    %508 = vmatprep.subr.mxu0 0.0
    %509 = vmatpush1.msra.mxu0 %v107
    %510 = vmatprep.subr.mxu0 0.0
    %511 = vmatpush1.msra.mxu0 %v106
    %512 = vmatprep.subr.mxu0 0.0
    %513 = vmatpush1.msra.mxu0 %v105
    %514 = vmatprep.subr.mxu0 0.0
    %515 = vmatpush2.msra.mxu0 0.0
    %516 = vmatprep.subr.mxu0 0.0
    %517 = vmatpush2.msra.mxu0 0.0
    %518 = vmatprep.subr.mxu0 0.0
    %519 = vmatpush2.msra.mxu0 0.0
    %520 = vmatprep.subr.mxu0 0.0
    %521 = vmatpush2.msra.mxu0 0.0
    %522 = vmatprep.subr.mxu0 0.0
    %523 = vmatpush2.msra.mxu0 0.0
    %524 = vmatprep.subr.mxu0 0.0
    %525 = vmatpush2.msra.mxu0 0.0
    %526 = vmatprep.subr.mxu0 0.0
    %527 = vmatpush2.msra.mxu0 0.0
    %528 = vmatprep.subr.mxu0 0.0
    %529 = vmatpush2.msra.mxu0 0.0
    %530 = vmatprep.subr.mxu0 0.0
    %531 = vmatpush2.msra.mxu0 0.0
    %532 = vmatprep.subr.mxu0 0.0
    %533 = vmatpush2.msra.mxu0 0.0
    %534 = vmatprep.subr.mxu0 0.0
    %535 = vmatpush2.msra.mxu0 0.0
    %536 = vmatprep.subr.mxu0 0.0
    %537 = vmatpush2.msra.mxu0 0.0
    %538 = vmatprep.subr.mxu0 0.0
    %539 = vmatpush2.msra.mxu0 0.0
    %540 = vmatprep.subr.mxu0 0.0
    %541 = vmatpush2.msra.mxu0 0.0
    %542 = vmatprep.subr.mxu0 0.0
    %543 = vmatpush2.msra.mxu0 0.0
    %544 = vmatprep.subr.mxu0 0.0
    %545 = vmatpush2.msra.mxu0 0.0
    %546 = vmatprep.mubr.f32.mxu0 0.0
    %547 = vmatmul.mubr.f32.gmra.mxu0 %v480
    %v548 = vpop.f32.mrf.mxu0
    %v549 = vadd.f32 0.0, %v548
    %v550 = vpop.f32.mrf.mxu0
    %551 = vdwg.mxu0
    %v553 = vsel %vm119, %v479, 0
    %555 = vmatprep.subr.mxu0 0.0
    %556 = vmatpush1.msra.mxu0 0.0
    %557 = vmatprep.subr.mxu0 0.0
    %558 = vmatpush1.msra.mxu0 0.0
    %559 = vmatprep.subr.mxu0 0.0
    %560 = vmatpush1.msra.mxu0 0.0
    %561 = vmatprep.subr.mxu0 0.0
    %562 = vmatpush1.msra.mxu0 0.0
    %563 = vmatprep.subr.mxu0 0.0
    %564 = vmatpush1.msra.mxu0 0.0
    %565 = vmatprep.subr.mxu0 0.0
    %566 = vmatpush1.msra.mxu0 0.0
    %567 = vmatprep.subr.mxu0 0.0
    %568 = vmatpush1.msra.mxu0 0.0
    %569 = vmatprep.subr.mxu0 0.0
    %570 = vmatpush1.msra.mxu0 0.0
    %571 = vmatprep.subr.mxu0 0.0
    %572 = vmatpush1.msra.mxu0 0.0
    %573 = vmatprep.subr.mxu0 0.0
    %574 = vmatpush1.msra.mxu0 0.0
    %575 = vmatprep.subr.mxu0 0.0
    %576 = vmatpush1.msra.mxu0 0.0
    %577 = vmatprep.subr.mxu0 0.0
    %578 = vmatpush1.msra.mxu0 0.0
    %579 = vmatprep.subr.mxu0 0.0
    %580 = vmatpush1.msra.mxu0 %v104
    %581 = vmatprep.subr.mxu0 0.0
    %582 = vmatpush1.msra.mxu0 %v103
    %583 = vmatprep.subr.mxu0 0.0
    %584 = vmatpush1.msra.mxu0 %v102
    %585 = vmatprep.subr.mxu0 0.0
    %586 = vmatpush1.msra.mxu0 %v101
    %587 = vmatprep.subr.mxu0 0.0
    %588 = vmatpush2.msra.mxu0 0.0
    %589 = vmatprep.subr.mxu0 0.0
    %590 = vmatpush2.msra.mxu0 0.0
    %591 = vmatprep.subr.mxu0 0.0
    %592 = vmatpush2.msra.mxu0 0.0
    %593 = vmatprep.subr.mxu0 0.0
    %594 = vmatpush2.msra.mxu0 0.0
    %595 = vmatprep.subr.mxu0 0.0
    %596 = vmatpush2.msra.mxu0 0.0
    %597 = vmatprep.subr.mxu0 0.0
    %598 = vmatpush2.msra.mxu0 0.0
    %599 = vmatprep.subr.mxu0 0.0
    %600 = vmatpush2.msra.mxu0 0.0
    %601 = vmatprep.subr.mxu0 0.0
    %602 = vmatpush2.msra.mxu0 0.0
    %603 = vmatprep.subr.mxu0 0.0
    %604 = vmatpush2.msra.mxu0 0.0
    %605 = vmatprep.subr.mxu0 0.0
    %606 = vmatpush2.msra.mxu0 0.0
    %607 = vmatprep.subr.mxu0 0.0
    %608 = vmatpush2.msra.mxu0 0.0
    %609 = vmatprep.subr.mxu0 0.0
    %610 = vmatpush2.msra.mxu0 0.0
    %611 = vmatprep.subr.mxu0 0.0
    %612 = vmatpush2.msra.mxu0 0.0
    %613 = vmatprep.subr.mxu0 0.0
    %614 = vmatpush2.msra.mxu0 0.0
    %615 = vmatprep.subr.mxu0 0.0
    %616 = vmatpush2.msra.mxu0 0.0
    %617 = vmatprep.subr.mxu0 0.0
    %618 = vmatpush2.msra.mxu0 0.0
    %619 = vmatprep.mubr.f32.mxu0 0.0
    %620 = vmatmul.mubr.f32.gmra.mxu0 %v553
    %v621 = vpop.f32.mrf.mxu0
    %v622 = vadd.f32 %v549, %v621
    %v623 = vpop.f32.mrf.mxu0
    %624 = vdwg.mxu0
    %v625 = vadd.f32 %v622, %v114
    %v626 = vxor.u32 %v625, 2147483648
    %v627 = vmul.f32 %v626, 1.442695
    %v628 = vpow.pop %v627
    %v629 = vadd.f32 %v628, 1.0
    %v630 = vrcp.pop %v629
    %v631 = vmul.f32 1.0, %v630
    %v632 = vtanh.pop %v625
    %v633 = vmul.f32 %v631, %v465
    %635 = vrot.lane.b32.xlu0 %v632, 32
    %v636 = vpop.permute.xlu0 %635
    %v638 = vmul.f32 %v631, %v636
    %640 = vrot.lane.b32.xlu0 %v638, 32
    %v641 = vpop.permute.xlu0 %640
    %v643 = vadd.f32 %v633, %v641
    %v644 = vtanh.pop %v643
    %646 = vrot.lane.b32.xlu0 %v644, 32
    %v647 = vpop.permute.xlu0 %646
    %v649 = vmul.f32 %v631, %v647
    %651 = vrot.lane.b32.xlu0 %v649, 64
    %v652 = vpop.permute.xlu0 %651
    %s654 = scalar_lea.vmem [#allocation13], 16
    %655 = vst.msk [vmem:[%s654] sm:$0xff] %vm119, %v652
    %s656 = scalar_lea.vmem [#allocation4], 24
    %v657 = vld [vmem:[%s656] sm:$0xff]
    %v658 = vsel %vm119, %v652, 0
    %660 = vmatprep.subr.mxu0 0.0
    %661 = vmatpush1.msra.mxu0 0.0
    %662 = vmatprep.subr.mxu0 0.0
    %663 = vmatpush1.msra.mxu0 0.0
    %664 = vmatprep.subr.mxu0 0.0
    %665 = vmatpush1.msra.mxu0 0.0
    %666 = vmatprep.subr.mxu0 0.0
    %667 = vmatpush1.msra.mxu0 0.0
    %668 = vmatprep.subr.mxu0 0.0
    %669 = vmatpush1.msra.mxu0 0.0
    %670 = vmatprep.subr.mxu0 0.0
    %671 = vmatpush1.msra.mxu0 0.0
    %672 = vmatprep.subr.mxu0 0.0
    %673 = vmatpush1.msra.mxu0 0.0
    %674 = vmatprep.subr.mxu0 0.0
    %675 = vmatpush1.msra.mxu0 0.0
    %676 = vmatprep.subr.mxu0 0.0
    %677 = vmatpush1.msra.mxu0 0.0
    %678 = vmatprep.subr.mxu0 0.0
    %679 = vmatpush1.msra.mxu0 0.0
    %680 = vmatprep.subr.mxu0 0.0
    %681 = vmatpush1.msra.mxu0 0.0
    %682 = vmatprep.subr.mxu0 0.0
    %683 = vmatpush1.msra.mxu0 0.0
    %684 = vmatprep.subr.mxu0 0.0
    %685 = vmatpush1.msra.mxu0 %v108
    %686 = vmatprep.subr.mxu0 0.0
    %687 = vmatpush1.msra.mxu0 %v107
    %688 = vmatprep.subr.mxu0 0.0
    %689 = vmatpush1.msra.mxu0 %v106
    %690 = vmatprep.subr.mxu0 0.0
    %691 = vmatpush1.msra.mxu0 %v105
    %692 = vmatprep.subr.mxu0 0.0
    %693 = vmatpush2.msra.mxu0 0.0
    %694 = vmatprep.subr.mxu0 0.0
    %695 = vmatpush2.msra.mxu0 0.0
    %696 = vmatprep.subr.mxu0 0.0
    %697 = vmatpush2.msra.mxu0 0.0
    %698 = vmatprep.subr.mxu0 0.0
    %699 = vmatpush2.msra.mxu0 0.0
    %700 = vmatprep.subr.mxu0 0.0
    %701 = vmatpush2.msra.mxu0 0.0
    %702 = vmatprep.subr.mxu0 0.0
    %703 = vmatpush2.msra.mxu0 0.0
    %704 = vmatprep.subr.mxu0 0.0
    %705 = vmatpush2.msra.mxu0 0.0
    %706 = vmatprep.subr.mxu0 0.0
    %707 = vmatpush2.msra.mxu0 0.0
    %708 = vmatprep.subr.mxu0 0.0
    %709 = vmatpush2.msra.mxu0 0.0
    %710 = vmatprep.subr.mxu0 0.0
    %711 = vmatpush2.msra.mxu0 0.0
    %712 = vmatprep.subr.mxu0 0.0
    %713 = vmatpush2.msra.mxu0 0.0
    %714 = vmatprep.subr.mxu0 0.0
    %715 = vmatpush2.msra.mxu0 0.0
    %716 = vmatprep.subr.mxu0 0.0
    %717 = vmatpush2.msra.mxu0 0.0
    %718 = vmatprep.subr.mxu0 0.0
    %719 = vmatpush2.msra.mxu0 0.0
    %720 = vmatprep.subr.mxu0 0.0
    %721 = vmatpush2.msra.mxu0 0.0
    %722 = vmatprep.subr.mxu0 0.0
    %723 = vmatpush2.msra.mxu0 0.0
    %724 = vmatprep.mubr.f32.mxu0 0.0
    %725 = vmatmul.mubr.f32.gmra.mxu0 %v658
    %v726 = vpop.f32.mrf.mxu0
    %v727 = vadd.f32 0.0, %v726
    %v728 = vpop.f32.mrf.mxu0
    %729 = vdwg.mxu0
    %v731 = vsel %vm119, %v657, 0
    %733 = vmatprep.subr.mxu0 0.0
    %734 = vmatpush1.msra.mxu0 0.0
    %735 = vmatprep.subr.mxu0 0.0
    %736 = vmatpush1.msra.mxu0 0.0
    %737 = vmatprep.subr.mxu0 0.0
    %738 = vmatpush1.msra.mxu0 0.0
    %739 = vmatprep.subr.mxu0 0.0
    %740 = vmatpush1.msra.mxu0 0.0
    %741 = vmatprep.subr.mxu0 0.0
    %742 = vmatpush1.msra.mxu0 0.0
    %743 = vmatprep.subr.mxu0 0.0
    %744 = vmatpush1.msra.mxu0 0.0
    %745 = vmatprep.subr.mxu0 0.0
    %746 = vmatpush1.msra.mxu0 0.0
    %747 = vmatprep.subr.mxu0 0.0
    %748 = vmatpush1.msra.mxu0 0.0
    %749 = vmatprep.subr.mxu0 0.0
    %750 = vmatpush1.msra.mxu0 0.0
    %751 = vmatprep.subr.mxu0 0.0
    %752 = vmatpush1.msra.mxu0 0.0
    %753 = vmatprep.subr.mxu0 0.0
    %754 = vmatpush1.msra.mxu0 0.0
    %755 = vmatprep.subr.mxu0 0.0
    %756 = vmatpush1.msra.mxu0 0.0
    %757 = vmatprep.subr.mxu0 0.0
    %758 = vmatpush1.msra.mxu0 %v104
    %759 = vmatprep.subr.mxu0 0.0
    %760 = vmatpush1.msra.mxu0 %v103
    %761 = vmatprep.subr.mxu0 0.0
    %762 = vmatpush1.msra.mxu0 %v102
    %763 = vmatprep.subr.mxu0 0.0
    %764 = vmatpush1.msra.mxu0 %v101
    %765 = vmatprep.subr.mxu0 0.0
    %766 = vmatpush2.msra.mxu0 0.0
    %767 = vmatprep.subr.mxu0 0.0
    %768 = vmatpush2.msra.mxu0 0.0
    %769 = vmatprep.subr.mxu0 0.0
    %770 = vmatpush2.msra.mxu0 0.0
    %771 = vmatprep.subr.mxu0 0.0
    %772 = vmatpush2.msra.mxu0 0.0
    %773 = vmatprep.subr.mxu0 0.0
    %774 = vmatpush2.msra.mxu0 0.0
    %775 = vmatprep.subr.mxu0 0.0
    %776 = vmatpush2.msra.mxu0 0.0
    %777 = vmatprep.subr.mxu0 0.0
    %778 = vmatpush2.msra.mxu0 0.0
    %779 = vmatprep.subr.mxu0 0.0
    %780 = vmatpush2.msra.mxu0 0.0
    %781 = vmatprep.subr.mxu0 0.0
    %782 = vmatpush2.msra.mxu0 0.0
    %783 = vmatprep.subr.mxu0 0.0
    %784 = vmatpush2.msra.mxu0 0.0
    %785 = vmatprep.subr.mxu0 0.0
    %786 = vmatpush2.msra.mxu0 0.0
    %787 = vmatprep.subr.mxu0 0.0
    %788 = vmatpush2.msra.mxu0 0.0
    %789 = vmatprep.subr.mxu0 0.0
    %790 = vmatpush2.msra.mxu0 0.0
    %791 = vmatprep.subr.mxu0 0.0
    %792 = vmatpush2.msra.mxu0 0.0
    %793 = vmatprep.subr.mxu0 0.0
    %794 = vmatpush2.msra.mxu0 0.0
    %795 = vmatprep.subr.mxu0 0.0
    %796 = vmatpush2.msra.mxu0 0.0
    %797 = vmatprep.mubr.f32.mxu0 0.0
    %798 = vmatmul.mubr.f32.gmra.mxu0 %v731
    %v799 = vpop.f32.mrf.mxu0
    %v800 = vadd.f32 %v727, %v799
    %v801 = vpop.f32.mrf.mxu0
    %802 = vdwg.mxu0
    %v803 = vadd.f32 %v800, %v114
    %v804 = vxor.u32 %v803, 2147483648
    %v805 = vmul.f32 %v804, 1.442695
    %v806 = vpow.pop %v805
    %v807 = vadd.f32 %v806, 1.0
    %v808 = vrcp.pop %v807
    %v809 = vmul.f32 1.0, %v808
    %v810 = vtanh.pop %v803
    %v811 = vmul.f32 %v809, %v643
    %813 = vrot.lane.b32.xlu0 %v810, 32
    %v814 = vpop.permute.xlu0 %813
    %v816 = vmul.f32 %v809, %v814
    %818 = vrot.lane.b32.xlu0 %v816, 32
    %v819 = vpop.permute.xlu0 %818
    %v821 = vadd.f32 %v811, %v819
    %v822 = vtanh.pop %v821
    %824 = vrot.lane.b32.xlu0 %v822, 32
    %v825 = vpop.permute.xlu0 %824
    %v827 = vmul.f32 %v809, %v825
    %829 = vrot.lane.b32.xlu0 %v827, 64
    %v830 = vpop.permute.xlu0 %829
    %s832 = scalar_lea.vmem [#allocation13], 24
    %833 = vst.msk [vmem:[%s832] sm:$0xff] %vm119, %v830
    %s834 = scalar_lea.vmem [#allocation4], 32
    %v835 = vld [vmem:[%s834] sm:$0xff]
    %v836 = vsel %vm119, %v830, 0
    %838 = vmatprep.subr.mxu0 0.0
    %839 = vmatpush1.msra.mxu0 0.0
    %840 = vmatprep.subr.mxu0 0.0
    %841 = vmatpush1.msra.mxu0 0.0
    %842 = vmatprep.subr.mxu0 0.0
    %843 = vmatpush1.msra.mxu0 0.0
    %844 = vmatprep.subr.mxu0 0.0
    %845 = vmatpush1.msra.mxu0 0.0
    %846 = vmatprep.subr.mxu0 0.0
    %847 = vmatpush1.msra.mxu0 0.0
    %848 = vmatprep.subr.mxu0 0.0
    %849 = vmatpush1.msra.mxu0 0.0
    %850 = vmatprep.subr.mxu0 0.0
    %851 = vmatpush1.msra.mxu0 0.0
    %852 = vmatprep.subr.mxu0 0.0
    %853 = vmatpush1.msra.mxu0 0.0
    %854 = vmatprep.subr.mxu0 0.0
    %855 = vmatpush1.msra.mxu0 0.0
    %856 = vmatprep.subr.mxu0 0.0
    %857 = vmatpush1.msra.mxu0 0.0
    %858 = vmatprep.subr.mxu0 0.0
    %859 = vmatpush1.msra.mxu0 0.0
    %860 = vmatprep.subr.mxu0 0.0
    %861 = vmatpush1.msra.mxu0 0.0
    %862 = vmatprep.subr.mxu0 0.0
    %863 = vmatpush1.msra.mxu0 %v108
    %864 = vmatprep.subr.mxu0 0.0
    %865 = vmatpush1.msra.mxu0 %v107
    %866 = vmatprep.subr.mxu0 0.0
    %867 = vmatpush1.msra.mxu0 %v106
    %868 = vmatprep.subr.mxu0 0.0
    %869 = vmatpush1.msra.mxu0 %v105
    %870 = vmatprep.subr.mxu0 0.0
    %871 = vmatpush2.msra.mxu0 0.0
    %872 = vmatprep.subr.mxu0 0.0
    %873 = vmatpush2.msra.mxu0 0.0
    %874 = vmatprep.subr.mxu0 0.0
    %875 = vmatpush2.msra.mxu0 0.0
    %876 = vmatprep.subr.mxu0 0.0
    %877 = vmatpush2.msra.mxu0 0.0
    %878 = vmatprep.subr.mxu0 0.0
    %879 = vmatpush2.msra.mxu0 0.0
    %880 = vmatprep.subr.mxu0 0.0
    %881 = vmatpush2.msra.mxu0 0.0
    %882 = vmatprep.subr.mxu0 0.0
    %883 = vmatpush2.msra.mxu0 0.0
    %884 = vmatprep.subr.mxu0 0.0
    %885 = vmatpush2.msra.mxu0 0.0
    %886 = vmatprep.subr.mxu0 0.0
    %887 = vmatpush2.msra.mxu0 0.0
    %888 = vmatprep.subr.mxu0 0.0
    %889 = vmatpush2.msra.mxu0 0.0
    %890 = vmatprep.subr.mxu0 0.0
    %891 = vmatpush2.msra.mxu0 0.0
    %892 = vmatprep.subr.mxu0 0.0
    %893 = vmatpush2.msra.mxu0 0.0
    %894 = vmatprep.subr.mxu0 0.0
    %895 = vmatpush2.msra.mxu0 0.0
    %896 = vmatprep.subr.mxu0 0.0
    %897 = vmatpush2.msra.mxu0 0.0
    %898 = vmatprep.subr.mxu0 0.0
    %899 = vmatpush2.msra.mxu0 0.0
    %900 = vmatprep.subr.mxu0 0.0
    %901 = vmatpush2.msra.mxu0 0.0
    %902 = vmatprep.mubr.f32.mxu0 0.0
    %903 = vmatmul.mubr.f32.gmra.mxu0 %v836
    %v904 = vpop.f32.mrf.mxu0
    %v905 = vadd.f32 0.0, %v904
    %v906 = vpop.f32.mrf.mxu0
    %907 = vdwg.mxu0
    %v909 = vsel %vm119, %v835, 0
    %911 = vmatprep.subr.mxu0 0.0
    %912 = vmatpush1.msra.mxu0 0.0
    %913 = vmatprep.subr.mxu0 0.0
    %914 = vmatpush1.msra.mxu0 0.0
    %915 = vmatprep.subr.mxu0 0.0
    %916 = vmatpush1.msra.mxu0 0.0
    %917 = vmatprep.subr.mxu0 0.0
    %918 = vmatpush1.msra.mxu0 0.0
    %919 = vmatprep.subr.mxu0 0.0
    %920 = vmatpush1.msra.mxu0 0.0
    %921 = vmatprep.subr.mxu0 0.0
    %922 = vmatpush1.msra.mxu0 0.0
    %923 = vmatprep.subr.mxu0 0.0
    %924 = vmatpush1.msra.mxu0 0.0
    %925 = vmatprep.subr.mxu0 0.0
    %926 = vmatpush1.msra.mxu0 0.0
    %927 = vmatprep.subr.mxu0 0.0
    %928 = vmatpush1.msra.mxu0 0.0
    %929 = vmatprep.subr.mxu0 0.0
    %930 = vmatpush1.msra.mxu0 0.0
    %931 = vmatprep.subr.mxu0 0.0
    %932 = vmatpush1.msra.mxu0 0.0
    %933 = vmatprep.subr.mxu0 0.0
    %934 = vmatpush1.msra.mxu0 0.0
    %935 = vmatprep.subr.mxu0 0.0
    %936 = vmatpush1.msra.mxu0 %v104
    %937 = vmatprep.subr.mxu0 0.0
    %938 = vmatpush1.msra.mxu0 %v103
    %939 = vmatprep.subr.mxu0 0.0
    %940 = vmatpush1.msra.mxu0 %v102
    %941 = vmatprep.subr.mxu0 0.0
    %942 = vmatpush1.msra.mxu0 %v101
    %943 = vmatprep.subr.mxu0 0.0
    %944 = vmatpush2.msra.mxu0 0.0
    %945 = vmatprep.subr.mxu0 0.0
    %946 = vmatpush2.msra.mxu0 0.0
    %947 = vmatprep.subr.mxu0 0.0
    %948 = vmatpush2.msra.mxu0 0.0
    %949 = vmatprep.subr.mxu0 0.0
    %950 = vmatpush2.msra.mxu0 0.0
    %951 = vmatprep.subr.mxu0 0.0
    %952 = vmatpush2.msra.mxu0 0.0
    %953 = vmatprep.subr.mxu0 0.0
    %954 = vmatpush2.msra.mxu0 0.0
    %955 = vmatprep.subr.mxu0 0.0
    %956 = vmatpush2.msra.mxu0 0.0
    %957 = vmatprep.subr.mxu0 0.0
    %958 = vmatpush2.msra.mxu0 0.0
    %959 = vmatprep.subr.mxu0 0.0
    %960 = vmatpush2.msra.mxu0 0.0
    %961 = vmatprep.subr.mxu0 0.0
    %962 = vmatpush2.msra.mxu0 0.0
    %963 = vmatprep.subr.mxu0 0.0
    %964 = vmatpush2.msra.mxu0 0.0
    %965 = vmatprep.subr.mxu0 0.0
    %966 = vmatpush2.msra.mxu0 0.0
    %967 = vmatprep.subr.mxu0 0.0
    %968 = vmatpush2.msra.mxu0 0.0
    %969 = vmatprep.subr.mxu0 0.0
    %970 = vmatpush2.msra.mxu0 0.0
    %971 = vmatprep.subr.mxu0 0.0
    %972 = vmatpush2.msra.mxu0 0.0
    %973 = vmatprep.subr.mxu0 0.0
    %974 = vmatpush2.msra.mxu0 0.0
    %975 = vmatprep.mubr.f32.mxu0 0.0
    %976 = vmatmul.mubr.f32.gmra.mxu0 %v909
    %v977 = vpop.f32.mrf.mxu0
    %v978 = vadd.f32 %v905, %v977
    %v979 = vpop.f32.mrf.mxu0
    %980 = vdwg.mxu0
    %v981 = vadd.f32 %v978, %v114
    %v982 = vxor.u32 %v981, 2147483648
    %v983 = vmul.f32 %v982, 1.442695
    %v984 = vpow.pop %v983
    %v985 = vadd.f32 %v984, 1.0
    %v986 = vrcp.pop %v985
    %v987 = vmul.f32 1.0, %v986
    %v988 = vtanh.pop %v981
    %v989 = vmul.f32 %v987, %v821
    %991 = vrot.lane.b32.xlu0 %v988, 32
    %v992 = vpop.permute.xlu0 %991
    %v994 = vmul.f32 %v987, %v992
    %996 = vrot.lane.b32.xlu0 %v994, 32
    %v997 = vpop.permute.xlu0 %996
    %v999 = vadd.f32 %v989, %v997
    %v1000 = vtanh.pop %v999
    %1002 = vrot.lane.b32.xlu0 %v1000, 32
    %v1003 = vpop.permute.xlu0 %1002
    %v1005 = vmul.f32 %v987, %v1003
    %1007 = vrot.lane.b32.xlu0 %v1005, 64
    %v1008 = vpop.permute.xlu0 %1007
    %s1010 = scalar_lea.vmem [#allocation13], 32
    %1011 = vst.msk [vmem:[%s1010] sm:$0xff] %vm119, %v1008
    %s1012 = scalar_lea.vmem [#allocation4], 40
    %v1013 = vld [vmem:[%s1012] sm:$0xff]
    %v1014 = vsel %vm119, %v1008, 0
    %1016 = vmatprep.subr.mxu0 0.0
    %1017 = vmatpush1.msra.mxu0 0.0
    %1018 = vmatprep.subr.mxu0 0.0
    %1019 = vmatpush1.msra.mxu0 0.0
    %1020 = vmatprep.subr.mxu0 0.0
    %1021 = vmatpush1.msra.mxu0 0.0
    %1022 = vmatprep.subr.mxu0 0.0
    %1023 = vmatpush1.msra.mxu0 0.0
    %1024 = vmatprep.subr.mxu0 0.0
    %1025 = vmatpush1.msra.mxu0 0.0
    %1026 = vmatprep.subr.mxu0 0.0
    %1027 = vmatpush1.msra.mxu0 0.0
    %1028 = vmatprep.subr.mxu0 0.0
    %1029 = vmatpush1.msra.mxu0 0.0
    %1030 = vmatprep.subr.mxu0 0.0
    %1031 = vmatpush1.msra.mxu0 0.0
    %1032 = vmatprep.subr.mxu0 0.0
    %1033 = vmatpush1.msra.mxu0 0.0
    %1034 = vmatprep.subr.mxu0 0.0
    %1035 = vmatpush1.msra.mxu0 0.0
    %1036 = vmatprep.subr.mxu0 0.0
    %1037 = vmatpush1.msra.mxu0 0.0
    %1038 = vmatprep.subr.mxu0 0.0
    %1039 = vmatpush1.msra.mxu0 0.0
    %1040 = vmatprep.subr.mxu0 0.0
    %1041 = vmatpush1.msra.mxu0 %v108
    %1042 = vmatprep.subr.mxu0 0.0
    %1043 = vmatpush1.msra.mxu0 %v107
    %1044 = vmatprep.subr.mxu0 0.0
    %1045 = vmatpush1.msra.mxu0 %v106
    %1046 = vmatprep.subr.mxu0 0.0
    %1047 = vmatpush1.msra.mxu0 %v105
    %1048 = vmatprep.subr.mxu0 0.0
    %1049 = vmatpush2.msra.mxu0 0.0
    %1050 = vmatprep.subr.mxu0 0.0
    %1051 = vmatpush2.msra.mxu0 0.0
    %1052 = vmatprep.subr.mxu0 0.0
    %1053 = vmatpush2.msra.mxu0 0.0
    %1054 = vmatprep.subr.mxu0 0.0
    %1055 = vmatpush2.msra.mxu0 0.0
    %1056 = vmatprep.subr.mxu0 0.0
    %1057 = vmatpush2.msra.mxu0 0.0
    %1058 = vmatprep.subr.mxu0 0.0
    %1059 = vmatpush2.msra.mxu0 0.0
    %1060 = vmatprep.subr.mxu0 0.0
    %1061 = vmatpush2.msra.mxu0 0.0
    %1062 = vmatprep.subr.mxu0 0.0
    %1063 = vmatpush2.msra.mxu0 0.0
    %1064 = vmatprep.subr.mxu0 0.0
    %1065 = vmatpush2.msra.mxu0 0.0
    %1066 = vmatprep.subr.mxu0 0.0
    %1067 = vmatpush2.msra.mxu0 0.0
    %1068 = vmatprep.subr.mxu0 0.0
    %1069 = vmatpush2.msra.mxu0 0.0
    %1070 = vmatprep.subr.mxu0 0.0
    %1071 = vmatpush2.msra.mxu0 0.0
    %1072 = vmatprep.subr.mxu0 0.0
    %1073 = vmatpush2.msra.mxu0 0.0
    %1074 = vmatprep.subr.mxu0 0.0
    %1075 = vmatpush2.msra.mxu0 0.0
    %1076 = vmatprep.subr.mxu0 0.0
    %1077 = vmatpush2.msra.mxu0 0.0
    %1078 = vmatprep.subr.mxu0 0.0
    %1079 = vmatpush2.msra.mxu0 0.0
    %1080 = vmatprep.mubr.f32.mxu0 0.0
    %1081 = vmatmul.mubr.f32.gmra.mxu0 %v1014
    %v1082 = vpop.f32.mrf.mxu0
    %v1083 = vadd.f32 0.0, %v1082
    %v1084 = vpop.f32.mrf.mxu0
    %1085 = vdwg.mxu0
    %v1087 = vsel %vm119, %v1013, 0
    %1089 = vmatprep.subr.mxu0 0.0
    %1090 = vmatpush1.msra.mxu0 0.0
    %1091 = vmatprep.subr.mxu0 0.0
    %1092 = vmatpush1.msra.mxu0 0.0
    %1093 = vmatprep.subr.mxu0 0.0
    %1094 = vmatpush1.msra.mxu0 0.0
    %1095 = vmatprep.subr.mxu0 0.0
    %1096 = vmatpush1.msra.mxu0 0.0
    %1097 = vmatprep.subr.mxu0 0.0
    %1098 = vmatpush1.msra.mxu0 0.0
    %1099 = vmatprep.subr.mxu0 0.0
    %1100 = vmatpush1.msra.mxu0 0.0
    %1101 = vmatprep.subr.mxu0 0.0
    %1102 = vmatpush1.msra.mxu0 0.0
    %1103 = vmatprep.subr.mxu0 0.0
    %1104 = vmatpush1.msra.mxu0 0.0
    %1105 = vmatprep.subr.mxu0 0.0
    %1106 = vmatpush1.msra.mxu0 0.0
    %1107 = vmatprep.subr.mxu0 0.0
    %1108 = vmatpush1.msra.mxu0 0.0
    %1109 = vmatprep.subr.mxu0 0.0
    %1110 = vmatpush1.msra.mxu0 0.0
    %1111 = vmatprep.subr.mxu0 0.0
    %1112 = vmatpush1.msra.mxu0 0.0
    %1113 = vmatprep.subr.mxu0 0.0
    %1114 = vmatpush1.msra.mxu0 %v104
    %1115 = vmatprep.subr.mxu0 0.0
    %1116 = vmatpush1.msra.mxu0 %v103
    %1117 = vmatprep.subr.mxu0 0.0
    %1118 = vmatpush1.msra.mxu0 %v102
    %1119 = vmatprep.subr.mxu0 0.0
    %1120 = vmatpush1.msra.mxu0 %v101
    %1121 = vmatprep.subr.mxu0 0.0
    %1122 = vmatpush2.msra.mxu0 0.0
    %1123 = vmatprep.subr.mxu0 0.0
    %1124 = vmatpush2.msra.mxu0 0.0
    %1125 = vmatprep.subr.mxu0 0.0
    %1126 = vmatpush2.msra.mxu0 0.0
    %1127 = vmatprep.subr.mxu0 0.0
    %1128 = vmatpush2.msra.mxu0 0.0
    %1129 = vmatprep.subr.mxu0 0.0
    %1130 = vmatpush2.msra.mxu0 0.0
    %1131 = vmatprep.subr.mxu0 0.0
    %1132 = vmatpush2.msra.mxu0 0.0
    %1133 = vmatprep.subr.mxu0 0.0
    %1134 = vmatpush2.msra.mxu0 0.0
    %1135 = vmatprep.subr.mxu0 0.0
    %1136 = vmatpush2.msra.mxu0 0.0
    %1137 = vmatprep.subr.mxu0 0.0
    %1138 = vmatpush2.msra.mxu0 0.0
    %1139 = vmatprep.subr.mxu0 0.0
    %1140 = vmatpush2.msra.mxu0 0.0
    %1141 = vmatprep.subr.mxu0 0.0
    %1142 = vmatpush2.msra.mxu0 0.0
    %1143 = vmatprep.subr.mxu0 0.0
    %1144 = vmatpush2.msra.mxu0 0.0
    %1145 = vmatprep.subr.mxu0 0.0
    %1146 = vmatpush2.msra.mxu0 0.0
    %1147 = vmatprep.subr.mxu0 0.0
    %1148 = vmatpush2.msra.mxu0 0.0
    %1149 = vmatprep.subr.mxu0 0.0
    %1150 = vmatpush2.msra.mxu0 0.0
    %1151 = vmatprep.subr.mxu0 0.0
    %1152 = vmatpush2.msra.mxu0 0.0
    %1153 = vmatprep.mubr.f32.mxu0 0.0
    %1154 = vmatmul.mubr.f32.gmra.mxu0 %v1087
    %v1155 = vpop.f32.mrf.mxu0
    %v1156 = vadd.f32 %v1083, %v1155
    %v1157 = vpop.f32.mrf.mxu0
    %1158 = vdwg.mxu0
    %v1159 = vadd.f32 %v1156, %v114
    %v1160 = vxor.u32 %v1159, 2147483648
    %v1161 = vmul.f32 %v1160, 1.442695
    %v1162 = vpow.pop %v1161
    %v1163 = vadd.f32 %v1162, 1.0
    %v1164 = vrcp.pop %v1163
    %v1165 = vmul.f32 1.0, %v1164
    %v1166 = vtanh.pop %v1159
    %v1167 = vmul.f32 %v1165, %v999
    %1169 = vrot.lane.b32.xlu0 %v1166, 32
    %v1170 = vpop.permute.xlu0 %1169
    %v1172 = vmul.f32 %v1165, %v1170
    %1174 = vrot.lane.b32.xlu0 %v1172, 32
    %v1175 = vpop.permute.xlu0 %1174
    %v1177 = vadd.f32 %v1167, %v1175
    %v1178 = vtanh.pop %v1177
    %1180 = vrot.lane.b32.xlu0 %v1178, 32
    %v1181 = vpop.permute.xlu0 %1180
    %v1183 = vmul.f32 %v1165, %v1181
    %1185 = vrot.lane.b32.xlu0 %v1183, 64
    %v1186 = vpop.permute.xlu0 %1185
    %s1188 = scalar_lea.vmem [#allocation13], 40
    %1189 = vst.msk [vmem:[%s1188] sm:$0xff] %vm119, %v1186
    %s1190 = scalar_lea.vmem [#allocation4], 48
    %v1191 = vld [vmem:[%s1190] sm:$0xff]
    %v1192 = vsel %vm119, %v1186, 0
    %1194 = vmatprep.subr.mxu0 0.0
    %1195 = vmatpush1.msra.mxu0 0.0
    %1196 = vmatprep.subr.mxu0 0.0
    %1197 = vmatpush1.msra.mxu0 0.0
    %1198 = vmatprep.subr.mxu0 0.0
    %1199 = vmatpush1.msra.mxu0 0.0
    %1200 = vmatprep.subr.mxu0 0.0
    %1201 = vmatpush1.msra.mxu0 0.0
    %1202 = vmatprep.subr.mxu0 0.0
    %1203 = vmatpush1.msra.mxu0 0.0
    %1204 = vmatprep.subr.mxu0 0.0
    %1205 = vmatpush1.msra.mxu0 0.0
    %1206 = vmatprep.subr.mxu0 0.0
    %1207 = vmatpush1.msra.mxu0 0.0
    %1208 = vmatprep.subr.mxu0 0.0
    %1209 = vmatpush1.msra.mxu0 0.0
    %1210 = vmatprep.subr.mxu0 0.0
    %1211 = vmatpush1.msra.mxu0 0.0
    %1212 = vmatprep.subr.mxu0 0.0
    %1213 = vmatpush1.msra.mxu0 0.0
    %1214 = vmatprep.subr.mxu0 0.0
    %1215 = vmatpush1.msra.mxu0 0.0
    %1216 = vmatprep.subr.mxu0 0.0
    %1217 = vmatpush1.msra.mxu0 0.0
    %1218 = vmatprep.subr.mxu0 0.0
    %1219 = vmatpush1.msra.mxu0 %v108
    %1220 = vmatprep.subr.mxu0 0.0
    %1221 = vmatpush1.msra.mxu0 %v107
    %1222 = vmatprep.subr.mxu0 0.0
    %1223 = vmatpush1.msra.mxu0 %v106
    %1224 = vmatprep.subr.mxu0 0.0
    %1225 = vmatpush1.msra.mxu0 %v105
    %1226 = vmatprep.subr.mxu0 0.0
    %1227 = vmatpush2.msra.mxu0 0.0
    %1228 = vmatprep.subr.mxu0 0.0
    %1229 = vmatpush2.msra.mxu0 0.0
    %1230 = vmatprep.subr.mxu0 0.0
    %1231 = vmatpush2.msra.mxu0 0.0
    %1232 = vmatprep.subr.mxu0 0.0
    %1233 = vmatpush2.msra.mxu0 0.0
    %1234 = vmatprep.subr.mxu0 0.0
    %1235 = vmatpush2.msra.mxu0 0.0
    %1236 = vmatprep.subr.mxu0 0.0
    %1237 = vmatpush2.msra.mxu0 0.0
    %1238 = vmatprep.subr.mxu0 0.0
    %1239 = vmatpush2.msra.mxu0 0.0
    %1240 = vmatprep.subr.mxu0 0.0
    %1241 = vmatpush2.msra.mxu0 0.0
    %1242 = vmatprep.subr.mxu0 0.0
    %1243 = vmatpush2.msra.mxu0 0.0
    %1244 = vmatprep.subr.mxu0 0.0
    %1245 = vmatpush2.msra.mxu0 0.0
    %1246 = vmatprep.subr.mxu0 0.0
    %1247 = vmatpush2.msra.mxu0 0.0
    %1248 = vmatprep.subr.mxu0 0.0
    %1249 = vmatpush2.msra.mxu0 0.0
    %1250 = vmatprep.subr.mxu0 0.0
    %1251 = vmatpush2.msra.mxu0 0.0
    %1252 = vmatprep.subr.mxu0 0.0
    %1253 = vmatpush2.msra.mxu0 0.0
    %1254 = vmatprep.subr.mxu0 0.0
    %1255 = vmatpush2.msra.mxu0 0.0
    %1256 = vmatprep.subr.mxu0 0.0
    %1257 = vmatpush2.msra.mxu0 0.0
    %1258 = vmatprep.mubr.f32.mxu0 0.0
    %1259 = vmatmul.mubr.f32.gmra.mxu0 %v1192
    %v1260 = vpop.f32.mrf.mxu0
    %v1261 = vadd.f32 0.0, %v1260
    %v1262 = vpop.f32.mrf.mxu0
    %1263 = vdwg.mxu0
    %v1265 = vsel %vm119, %v1191, 0
    %1267 = vmatprep.subr.mxu0 0.0
    %1268 = vmatpush1.msra.mxu0 0.0
    %1269 = vmatprep.subr.mxu0 0.0
    %1270 = vmatpush1.msra.mxu0 0.0
    %1271 = vmatprep.subr.mxu0 0.0
    %1272 = vmatpush1.msra.mxu0 0.0
    %1273 = vmatprep.subr.mxu0 0.0
    %1274 = vmatpush1.msra.mxu0 0.0
    %1275 = vmatprep.subr.mxu0 0.0
    %1276 = vmatpush1.msra.mxu0 0.0
    %1277 = vmatprep.subr.mxu0 0.0
    %1278 = vmatpush1.msra.mxu0 0.0
    %1279 = vmatprep.subr.mxu0 0.0
    %1280 = vmatpush1.msra.mxu0 0.0
    %1281 = vmatprep.subr.mxu0 0.0
    %1282 = vmatpush1.msra.mxu0 0.0
    %1283 = vmatprep.subr.mxu0 0.0
    %1284 = vmatpush1.msra.mxu0 0.0
    %1285 = vmatprep.subr.mxu0 0.0
    %1286 = vmatpush1.msra.mxu0 0.0
    %1287 = vmatprep.subr.mxu0 0.0
    %1288 = vmatpush1.msra.mxu0 0.0
    %1289 = vmatprep.subr.mxu0 0.0
    %1290 = vmatpush1.msra.mxu0 0.0
    %1291 = vmatprep.subr.mxu0 0.0
    %1292 = vmatpush1.msra.mxu0 %v104
    %1293 = vmatprep.subr.mxu0 0.0
    %1294 = vmatpush1.msra.mxu0 %v103
    %1295 = vmatprep.subr.mxu0 0.0
    %1296 = vmatpush1.msra.mxu0 %v102
    %1297 = vmatprep.subr.mxu0 0.0
    %1298 = vmatpush1.msra.mxu0 %v101
    %1299 = vmatprep.subr.mxu0 0.0
    %1300 = vmatpush2.msra.mxu0 0.0
    %1301 = vmatprep.subr.mxu0 0.0
    %1302 = vmatpush2.msra.mxu0 0.0
    %1303 = vmatprep.subr.mxu0 0.0
    %1304 = vmatpush2.msra.mxu0 0.0
    %1305 = vmatprep.subr.mxu0 0.0
    %1306 = vmatpush2.msra.mxu0 0.0
    %1307 = vmatprep.subr.mxu0 0.0
    %1308 = vmatpush2.msra.mxu0 0.0
    %1309 = vmatprep.subr.mxu0 0.0
    %1310 = vmatpush2.msra.mxu0 0.0
    %1311 = vmatprep.subr.mxu0 0.0
    %1312 = vmatpush2.msra.mxu0 0.0
    %1313 = vmatprep.subr.mxu0 0.0
    %1314 = vmatpush2.msra.mxu0 0.0
    %1315 = vmatprep.subr.mxu0 0.0
    %1316 = vmatpush2.msra.mxu0 0.0
    %1317 = vmatprep.subr.mxu0 0.0
    %1318 = vmatpush2.msra.mxu0 0.0
    %1319 = vmatprep.subr.mxu0 0.0
    %1320 = vmatpush2.msra.mxu0 0.0
    %1321 = vmatprep.subr.mxu0 0.0
    %1322 = vmatpush2.msra.mxu0 0.0
    %1323 = vmatprep.subr.mxu0 0.0
    %1324 = vmatpush2.msra.mxu0 0.0
    %1325 = vmatprep.subr.mxu0 0.0
    %1326 = vmatpush2.msra.mxu0 0.0
    %1327 = vmatprep.subr.mxu0 0.0
    %1328 = vmatpush2.msra.mxu0 0.0
    %1329 = vmatprep.subr.mxu0 0.0
    %1330 = vmatpush2.msra.mxu0 0.0
    %1331 = vmatprep.mubr.f32.mxu0 0.0
    %1332 = vmatmul.mubr.f32.gmra.mxu0 %v1265
    %v1333 = vpop.f32.mrf.mxu0
    %v1334 = vadd.f32 %v1261, %v1333
    %v1335 = vpop.f32.mrf.mxu0
    %1336 = vdwg.mxu0
    %v1337 = vadd.f32 %v1334, %v114
    %v1338 = vxor.u32 %v1337, 2147483648
    %v1339 = vmul.f32 %v1338, 1.442695
    %v1340 = vpow.pop %v1339
    %v1341 = vadd.f32 %v1340, 1.0
    %v1342 = vrcp.pop %v1341
    %v1343 = vmul.f32 1.0, %v1342
    %v1344 = vtanh.pop %v1337
    %v1345 = vmul.f32 %v1343, %v1177
    %1347 = vrot.lane.b32.xlu0 %v1344, 32
    %v1348 = vpop.permute.xlu0 %1347
    %v1350 = vmul.f32 %v1343, %v1348
    %1352 = vrot.lane.b32.xlu0 %v1350, 32
    %v1353 = vpop.permute.xlu0 %1352
    %v1355 = vadd.f32 %v1345, %v1353
    %v1356 = vtanh.pop %v1355
    %1358 = vrot.lane.b32.xlu0 %v1356, 32
    %v1359 = vpop.permute.xlu0 %1358
    %v1361 = vmul.f32 %v1343, %v1359
    %1363 = vrot.lane.b32.xlu0 %v1361, 64
    %v1364 = vpop.permute.xlu0 %1363
    %s1366 = scalar_lea.vmem [#allocation13], 48
    %1367 = vst.msk [vmem:[%s1366] sm:$0xff] %vm119, %v1364
    %s1368 = scalar_lea.vmem [#allocation4], 56
    %v1369 = vld [vmem:[%s1368] sm:$0xff]
    %v1370 = vsel %vm119, %v1364, 0
    %1372 = vmatprep.subr.mxu0 0.0
    %1373 = vmatpush1.msra.mxu0 0.0
    %1374 = vmatprep.subr.mxu0 0.0
    %1375 = vmatpush1.msra.mxu0 0.0
    %1376 = vmatprep.subr.mxu0 0.0
    %1377 = vmatpush1.msra.mxu0 0.0
    %1378 = vmatprep.subr.mxu0 0.0
    %1379 = vmatpush1.msra.mxu0 0.0
    %1380 = vmatprep.subr.mxu0 0.0
    %1381 = vmatpush1.msra.mxu0 0.0
    %1382 = vmatprep.subr.mxu0 0.0
    %1383 = vmatpush1.msra.mxu0 0.0
    %1384 = vmatprep.subr.mxu0 0.0
    %1385 = vmatpush1.msra.mxu0 0.0
    %1386 = vmatprep.subr.mxu0 0.0
    %1387 = vmatpush1.msra.mxu0 0.0
    %1388 = vmatprep.subr.mxu0 0.0
    %1389 = vmatpush1.msra.mxu0 0.0
    %1390 = vmatprep.subr.mxu0 0.0
    %1391 = vmatpush1.msra.mxu0 0.0
    %1392 = vmatprep.subr.mxu0 0.0
    %1393 = vmatpush1.msra.mxu0 0.0
    %1394 = vmatprep.subr.mxu0 0.0
    %1395 = vmatpush1.msra.mxu0 0.0
    %1396 = vmatprep.subr.mxu0 0.0
    %1397 = vmatpush1.msra.mxu0 %v108
    %1398 = vmatprep.subr.mxu0 0.0
    %1399 = vmatpush1.msra.mxu0 %v107
    %1400 = vmatprep.subr.mxu0 0.0
    %1401 = vmatpush1.msra.mxu0 %v106
    %1402 = vmatprep.subr.mxu0 0.0
    %1403 = vmatpush1.msra.mxu0 %v105
    %1404 = vmatprep.subr.mxu0 0.0
    %1405 = vmatpush2.msra.mxu0 0.0
    %1406 = vmatprep.subr.mxu0 0.0
    %1407 = vmatpush2.msra.mxu0 0.0
    %1408 = vmatprep.subr.mxu0 0.0
    %1409 = vmatpush2.msra.mxu0 0.0
    %1410 = vmatprep.subr.mxu0 0.0
    %1411 = vmatpush2.msra.mxu0 0.0
    %1412 = vmatprep.subr.mxu0 0.0
    %1413 = vmatpush2.msra.mxu0 0.0
    %1414 = vmatprep.subr.mxu0 0.0
    %1415 = vmatpush2.msra.mxu0 0.0
    %1416 = vmatprep.subr.mxu0 0.0
    %1417 = vmatpush2.msra.mxu0 0.0
    %1418 = vmatprep.subr.mxu0 0.0
    %1419 = vmatpush2.msra.mxu0 0.0
    %1420 = vmatprep.subr.mxu0 0.0
    %1421 = vmatpush2.msra.mxu0 0.0
    %1422 = vmatprep.subr.mxu0 0.0
    %1423 = vmatpush2.msra.mxu0 0.0
    %1424 = vmatprep.subr.mxu0 0.0
    %1425 = vmatpush2.msra.mxu0 0.0
    %1426 = vmatprep.subr.mxu0 0.0
    %1427 = vmatpush2.msra.mxu0 0.0
    %1428 = vmatprep.subr.mxu0 0.0
    %1429 = vmatpush2.msra.mxu0 0.0
    %1430 = vmatprep.subr.mxu0 0.0
    %1431 = vmatpush2.msra.mxu0 0.0
    %1432 = vmatprep.subr.mxu0 0.0
    %1433 = vmatpush2.msra.mxu0 0.0
    %1434 = vmatprep.subr.mxu0 0.0
    %1435 = vmatpush2.msra.mxu0 0.0
    %1436 = vmatprep.mubr.f32.mxu0 0.0
    %1437 = vmatmul.mubr.f32.gmra.mxu0 %v1370
    %v1438 = vpop.f32.mrf.mxu0
    %v1439 = vadd.f32 0.0, %v1438
    %v1440 = vpop.f32.mrf.mxu0
    %1441 = vdwg.mxu0
    %v1443 = vsel %vm119, %v1369, 0
    %1445 = vmatprep.subr.mxu0 0.0
    %1446 = vmatpush1.msra.mxu0 0.0
    %1447 = vmatprep.subr.mxu0 0.0
    %1448 = vmatpush1.msra.mxu0 0.0
    %1449 = vmatprep.subr.mxu0 0.0
    %1450 = vmatpush1.msra.mxu0 0.0
    %1451 = vmatprep.subr.mxu0 0.0
    %1452 = vmatpush1.msra.mxu0 0.0
    %1453 = vmatprep.subr.mxu0 0.0
    %1454 = vmatpush1.msra.mxu0 0.0
    %1455 = vmatprep.subr.mxu0 0.0
    %1456 = vmatpush1.msra.mxu0 0.0
    %1457 = vmatprep.subr.mxu0 0.0
    %1458 = vmatpush1.msra.mxu0 0.0
    %1459 = vmatprep.subr.mxu0 0.0
    %1460 = vmatpush1.msra.mxu0 0.0
    %1461 = vmatprep.subr.mxu0 0.0
    %1462 = vmatpush1.msra.mxu0 0.0
    %1463 = vmatprep.subr.mxu0 0.0
    %1464 = vmatpush1.msra.mxu0 0.0
    %1465 = vmatprep.subr.mxu0 0.0
    %1466 = vmatpush1.msra.mxu0 0.0
    %1467 = vmatprep.subr.mxu0 0.0
    %1468 = vmatpush1.msra.mxu0 0.0
    %1469 = vmatprep.subr.mxu0 0.0
    %1470 = vmatpush1.msra.mxu0 %v104
    %1471 = vmatprep.subr.mxu0 0.0
    %1472 = vmatpush1.msra.mxu0 %v103
    %1473 = vmatprep.subr.mxu0 0.0
    %1474 = vmatpush1.msra.mxu0 %v102
    %1475 = vmatprep.subr.mxu0 0.0
    %1476 = vmatpush1.msra.mxu0 %v101
    %1477 = vmatprep.subr.mxu0 0.0
    %1478 = vmatpush2.msra.mxu0 0.0
    %1479 = vmatprep.subr.mxu0 0.0
    %1480 = vmatpush2.msra.mxu0 0.0
    %1481 = vmatprep.subr.mxu0 0.0
    %1482 = vmatpush2.msra.mxu0 0.0
    %1483 = vmatprep.subr.mxu0 0.0
    %1484 = vmatpush2.msra.mxu0 0.0
    %1485 = vmatprep.subr.mxu0 0.0
    %1486 = vmatpush2.msra.mxu0 0.0
    %1487 = vmatprep.subr.mxu0 0.0
    %1488 = vmatpush2.msra.mxu0 0.0
    %1489 = vmatprep.subr.mxu0 0.0
    %1490 = vmatpush2.msra.mxu0 0.0
    %1491 = vmatprep.subr.mxu0 0.0
    %1492 = vmatpush2.msra.mxu0 0.0
    %1493 = vmatprep.subr.mxu0 0.0
    %1494 = vmatpush2.msra.mxu0 0.0
    %1495 = vmatprep.subr.mxu0 0.0
    %1496 = vmatpush2.msra.mxu0 0.0
    %1497 = vmatprep.subr.mxu0 0.0
    %1498 = vmatpush2.msra.mxu0 0.0
    %1499 = vmatprep.subr.mxu0 0.0
    %1500 = vmatpush2.msra.mxu0 0.0
    %1501 = vmatprep.subr.mxu0 0.0
    %1502 = vmatpush2.msra.mxu0 0.0
    %1503 = vmatprep.subr.mxu0 0.0
    %1504 = vmatpush2.msra.mxu0 0.0
    %1505 = vmatprep.subr.mxu0 0.0
    %1506 = vmatpush2.msra.mxu0 0.0
    %1507 = vmatprep.subr.mxu0 0.0
    %1508 = vmatpush2.msra.mxu0 0.0
    %1509 = vmatprep.mubr.f32.mxu0 0.0
    %1510 = vmatmul.mubr.f32.gmra.mxu0 %v1443
    %v1511 = vpop.f32.mrf.mxu0
    %v1512 = vadd.f32 %v1439, %v1511
    %v1513 = vpop.f32.mrf.mxu0
    %1514 = vdwg.mxu0
    %v1515 = vadd.f32 %v1512, %v114
    %v1516 = vxor.u32 %v1515, 2147483648
    %v1517 = vmul.f32 %v1516, 1.442695
    %v1518 = vpow.pop %v1517
    %v1519 = vadd.f32 %v1518, 1.0
    %v1520 = vrcp.pop %v1519
    %v1521 = vmul.f32 1.0, %v1520
    %v1522 = vtanh.pop %v1515
    %v1523 = vmul.f32 %v1521, %v1355
    %1525 = vrot.lane.b32.xlu0 %v1522, 32
    %v1526 = vpop.permute.xlu0 %1525
    %v1528 = vmul.f32 %v1521, %v1526
    %1530 = vrot.lane.b32.xlu0 %v1528, 32
    %v1531 = vpop.permute.xlu0 %1530
    %v1533 = vadd.f32 %v1523, %v1531
    %v1534 = vtanh.pop %v1533
    %1536 = vrot.lane.b32.xlu0 %v1534, 32
    %v1537 = vpop.permute.xlu0 %1536
    %v1539 = vmul.f32 %v1521, %v1537
    %1541 = vrot.lane.b32.xlu0 %v1539, 64
    %v1542 = vpop.permute.xlu0 %1541
    %s1544 = scalar_lea.vmem [#allocation13], 56
    %1545 = vst.msk [vmem:[%s1544] sm:$0xff] %vm119, %v1542
    %1546 = vst.msk [vmem:[#allocation2] sm:$0xff] %vm119, %v1542
    %1548 = vrot.lane.b32.xlu0 %v1533, 96
    %v1549 = vpop.permute.xlu0 %1548
    %1551 = vst.msk [vmem:[#allocation3] sm:$0xff] %vm119, %v1549
    // Predicated region
    $region50: #{tpu_custom_call.1} parent=1 // pred_check
      %p1552 = pneg %p92
    $region51: #{tpu_custom_call.1} parent=1 // pred_check_branch
      %1554 = sbr.rel (%p1552) target = $region53
    $region52: #{tpu_custom_call.1} parent=1 // pred_region
      %1555 = vst.msk [vmem:[#allocation14] sm:$0xff] %vm119, %v1542
      %1556 = vst.msk [vmem:[#allocation16] sm:$0xff] %vm119, %v1549
    $region53: #{tpu_custom_call.1} parent=1 // pred_fallthru
      _
    // Predicated region
    $region54: #{tpu_custom_call.1} parent=1 // pred_check
      _
    $region55: #{tpu_custom_call.1} parent=1 // pred_check_branch
      %1558 = sbr.rel (0) target = $region57
    $region56: #{tpu_custom_call.1} parent=1 // pred_region
      %s1560 = ssub.s32 1024, 1024
      %1561 = vsyncadd [#allocation6], %s1560
      %s1562 = sshll.u32 [#allocation13], 4
      %s1563 = int_to_ptr.vmem [resolvable:$true] %s1562
      %1568 = dma.vmem_to_hbm [thread:$0]  %s1563, 1024, %s6, [#allocation6], 128, 128, 8
    $region57: #{tpu_custom_call.1} parent=1 // pred_fallthru
      _
    // Predicated region
    $region58: #{tpu_custom_call.1} parent=1 // pred_check
      _
    $region59: #{tpu_custom_call.1} parent=1 // pred_check_branch
      %1570 = sbr.rel (0) target = $region61
    $region60: #{tpu_custom_call.1} parent=1 // pred_region
      %s1572 = ssub.s32 128, 128
      %1573 = vsyncadd [#allocation15], %s1572
      %s1575 = sshll.u32 [#allocation14], 4
      %s1576 = int_to_ptr.vmem [resolvable:$true] %s1575
      %1578 = dma.vmem_to_hbm [thread:$0]  %s1576, 128, %s7, [#allocation15]
    $region61: #{tpu_custom_call.1} parent=1 // pred_fallthru
      _
    // Predicated region
    $region62: #{tpu_custom_call.1} parent=1 // pred_check
      _
    $region63: #{tpu_custom_call.1} parent=1 // pred_check_branch
      %1580 = sbr.rel (0) target = $region65
    $region64: #{tpu_custom_call.1} parent=1 // pred_region
      %s1582 = ssub.s32 128, 128
      %1583 = vsyncadd [#allocation15], %s1582
      %s1585 = sshll.u32 [#allocation16], 4
      %s1586 = int_to_ptr.vmem [resolvable:$true] %s1585
      %1588 = dma.vmem_to_hbm [thread:$0]  %s1586, 128, %s8, [#allocation15]
    $region65: #{tpu_custom_call.1} parent=1 // pred_fallthru
      _
    // Predicated region
    $region66: #{tpu_custom_call.1} parent=1 // pred_check
      _
    $region67: #{tpu_custom_call.1} parent=1 // pred_check_branch
      %1590 = sbr.rel (0) target = $region69
    $region68: #{tpu_custom_call.1} parent=1 // pred_region
      %1591 = dma.done [#allocation6], 1024
    $region69: #{tpu_custom_call.1} parent=1 // pred_fallthru
      _
    // Predicated region
    $region70: #{tpu_custom_call.1} parent=1 // pred_check
      _
    $region71: #{tpu_custom_call.1} parent=1 // pred_check_branch
      %1593 = sbr.rel (0) target = $region73
    $region72: #{tpu_custom_call.1} parent=1 // pred_region
      %1594 = dma.done [#allocation15], 128
    $region73: #{tpu_custom_call.1} parent=1 // pred_fallthru
      _
    // Predicated region
    $region74: #{tpu_custom_call.1} parent=1 // pred_check
      _
    $region75: #{tpu_custom_call.1} parent=1 // pred_check_branch
      %1596 = sbr.rel (0) target = $region77
    $region76: #{tpu_custom_call.1} parent=1 // pred_region
      %1597 = dma.done [#allocation15], 128
    $region77: #{tpu_custom_call.1} parent=1 // pred_fallthru
      _
    %1598 = vsyncpa [#allocation5], 1
    %1599 = vsyncpa [#allocation8], 1
    %1600 = vsyncpa [#allocation11], 1
    %1601 = vsyncpa [#allocation6], 1
    %1602 = vsyncpa [#allocation15], 1

</llo_original>
